<compile_context>
chip_gen: v5e
topology: v5e:2x2
jax: 0.10.0
libtpu: 0.0.40
codegen_flags: <defaults>
</compile_context>

<pallas_src>
import functools

import jax
import jax.numpy as jnp
from jax.experimental import pallas as pl
from jax.experimental.pallas import tpu as pltpu

_H = 128  # padded hidden width (all true hidden dims are <= 128)


def _round_up(n, m):
    return -(-n // m) * m


def _default_act_dtype():
    """bf16 intermediate activations on chips with bf16 VPU/EUP (v6e/v7x);
    f32 everywhere else (v5e and older have no bf16 vector arithmetic)."""
    try:
        kind = jax.devices()[0].device_kind.lower()
    except Exception:
        return jnp.float32
    if any(tag in kind for tag in ("v6", "v7", "tpu7")):
        return jnp.bfloat16
    return jnp.float32


def _choose_tile(B, block_b):
    """Largest multiple-of-8 batch tile <= block_b, keeping >= 2 grid steps
    when the batch allows it (megacore sharding on v7x)."""
    B8 = _round_up(max(B, 1), 8)
    tb = min(_round_up(block_b, 8), B8)
    if B8 >= 16:
        half = _round_up(-(-B8 // 2), 8)
        tb = min(tb, half)
    return max(tb, 8)


def autoencoder3d_kernel(x_ref, w1_ref, wmid_ref, w8_ref, bhid_ref, bout_ref,
                         o_ref, *, act_dtype):
    """Fused 8-layer MLP on a (TB, F) batch tile.

    x_ref   : (TB, F)       f32   activations
    w1_ref  : (F, 128)      bf16  layer 1 weight (unpadded K)
    wmid_ref: (6, 128, 128) bf16  layers 2..7 weights (zero-padded)
    w8_ref  : (128, F_pad)  bf16  layer 8 weight (zero-padded N)
    bhid_ref: (8, 128)      f32   layers 1..7 biases in rows 0..6 (zero-padded)
    bout_ref: (1, F_pad)    f32   layer 8 bias (zero-padded)
    o_ref   : (TB, F_pad)   f32   lane-dense output
    """

    def lin(h, w, b):
        # bf16 x bf16 on the MXU, f32 accumulation; bias add in f32.
        return jnp.dot(h.astype(jnp.bfloat16), w,
                       preferred_element_type=jnp.float32) + b

    h = x_ref[...]  # (TB, F) f32

    # encoder layer 1: F -> 128, ReLU
    h = jnp.maximum(lin(h, w1_ref[...], bhid_ref[0:1, :]), 0.0).astype(act_dtype)

    # layers 2..7 (128->64->32->bottleneck->32->64->128, padded to 128), ReLU
    for l in range(6):
        h = jnp.maximum(lin(h, wmid_ref[l], bhid_ref[l + 1:l + 2, :]),
                        0.0).astype(act_dtype)

    # decoder last layer: 128 -> F_pad, Tanh (kept in f32, matches output dtype)
    h = jnp.tanh(lin(h, w8_ref[...], bout_ref[...]))

    o_ref[...] = h.astype(o_ref.dtype)


def autoencoder3d_forward(x, packed, space_dim, *, block_b=1024, act_dtype=None):
    """Forward pass.

    x: (D_in, space_dim) single point cloud (matches the torch module), or
       (B, D_in, space_dim) batch of point clouds.
    packed: output of pack_params().
    """
    w1_p, wmid_p, w8_p, b_hid, b_out = packed

    if act_dtype is None:
        act_dtype = _default_act_dtype()

    single = (x.ndim == 2)
    xb = x[None] if single else x
    B = xb.shape[0]
    F = xb.shape[1] * xb.shape[2]
    F_pad = w8_p.shape[1]
    assert w1_p.shape[0] == F, "packed params do not match input feature size"

    TB = _choose_tile(B, block_b)
    B_pad = _round_up(B, TB)
    grid = B_pad // TB

    # (B, D_in, space_dim) -> (B, F) is a free (contiguous) reshape; rows are
    # only zero-padded when TB does not divide B (never for typical batches).
    x_flat = xb.reshape(B, F).astype(jnp.float32)
    if B_pad != B:
        x_flat = jnp.pad(x_flat, ((0, B_pad - B), (0, 0)))

    kernel = functools.partial(autoencoder3d_kernel, act_dtype=act_dtype)

    out = pl.pallas_call(
        kernel,
        grid=(grid,),
        in_specs=[
            # activation tile streams over the grid (double-buffered)
            pl.BlockSpec((TB, F), lambda i: (i, 0)),
            # parameters: constant block index -> VMEM-resident, single-buffered
            pl.BlockSpec((F, _H), lambda i: (0, 0),
                         pipeline_mode=pl.Buffered(1)),
            pl.BlockSpec((6, _H, _H), lambda i: (0, 0, 0),
                         pipeline_mode=pl.Buffered(1)),
            pl.BlockSpec((_H, F_pad), lambda i: (0, 0),
                         pipeline_mode=pl.Buffered(1)),
            pl.BlockSpec((8, _H), lambda i: (0, 0),
                         pipeline_mode=pl.Buffered(1)),
            pl.BlockSpec((1, F_pad), lambda i: (0, 0),
                         pipeline_mode=pl.Buffered(1)),
        ],
        out_specs=pl.BlockSpec((TB, F_pad), lambda i: (i, 0)),
        out_shape=jax.ShapeDtypeStruct((B_pad, F_pad), jnp.float32),
        compiler_params=pltpu.CompilerParams(
            dimension_semantics=("parallel",),
            vmem_limit_bytes=32 << 20),
    )(x_flat, w1_p, wmid_p, w8_p, b_hid, b_out)

    if B_pad != B or F_pad != F:
        out = out[:B, :F]
    y = out.reshape(B, -1, space_dim)
    return y[0] if single else y


def init_params(key, D_in, space_dim, bottleneck_size):
    """torch.nn.Linear-style init; weights stored transposed as (in, out)."""
    F = D_in * space_dim
    dims = [F, 128, 64, 32, bottleneck_size, 32, 64, 128, F]
    params = []
    for i in range(len(dims) - 1):
        fan_in, fan_out = dims[i], dims[i + 1]
        key, kw, kb = jax.random.split(key, 3)
        bound = 1.0 / jnp.sqrt(float(fan_in))
        w = jax.random.uniform(kw, (fan_in, fan_out), jnp.float32, -bound, bound)
        b = jax.random.uniform(kb, (fan_out,), jnp.float32, -bound, bound)
        params.append((w, b))
    return params


def pack_params(params):
    """Pack the 8 (w, b) pairs into 5 padded, kernel-friendly buffers."""
    F = params[0][0].shape[0]
    F_pad = _round_up(F, _H)
    assert all(p[0].shape[1] <= _H for p in params[:-1]), "hidden dims must be <= 128"

    # layer 1: (F, 128), no padding needed (out dim is exactly 128)
    w1_p = params[0][0].astype(jnp.bfloat16)

    # layers 2..7: zero-padded to (128, 128)
    wmid_p = jnp.zeros((6, _H, _H), jnp.bfloat16)
    for l in range(6):
        w = params[l + 1][0]
        wmid_p = wmid_p.at[l, :w.shape[0], :w.shape[1]].set(w.astype(jnp.bfloat16))

    # layer 8: zero-padded to (128, F_pad)
    w8 = params[7][0]
    w8_p = jnp.zeros((_H, F_pad), jnp.bfloat16)
    w8_p = w8_p.at[:w8.shape[0], :F].set(w8.astype(jnp.bfloat16))

    # hidden biases (layers 1..7) padded to 128 lanes; output bias to F_pad
    b_hid = jnp.zeros((8, _H), jnp.float32)
    for l in range(7):
        b = params[l][1]
        b_hid = b_hid.at[l, :b.shape[0]].set(b.astype(jnp.float32))
    b_out = jnp.zeros((1, F_pad), jnp.float32)
    b_out = b_out.at[0, :F].set(params[7][1].astype(jnp.float32))

    return (w1_p, wmid_p, w8_p, b_hid, b_out)


def reference_forward(x, params, space_dim, act_dtype=jnp.float32):
    """Pure-JAX reference using the same precision recipe as the kernel
    (bf16 weights/matmul inputs, f32 accumulation, act_dtype intermediates)."""
    single = (x.ndim == 2)
    xb = x[None] if single else x
    B = xb.shape[0]
    h = xb.reshape(B, -1).astype(jnp.float32)
    n = len(params)
    for i, (w, b) in enumerate(params):
        z = jnp.dot(h.astype(jnp.bfloat16), w.astype(jnp.bfloat16),
                    preferred_element_type=jnp.float32) + b.astype(jnp.float32)
        if i < n - 1:
            h = jnp.maximum(z, 0.0).astype(act_dtype)
        else:
            h = jnp.tanh(z)
    y = h.reshape(B, -1, space_dim)
    return y[0] if single else y


if __name__ == "__main__":
    # Small shapes consistent with the module: D_in points in 3-D space.
    D_in = 16
    space_dim = 3
    bottleneck_size = 16
    batch = 256  # -> TB=128, grid=2 (both v7x TensorCores busy), no padding

    key = jax.random.PRNGKey(0)
    key, kx = jax.random.split(key)
    x = jax.random.normal(kx, (batch, D_in, space_dim), jnp.float32)

    params = init_params(key, D_in, space_dim, bottleneck_size)
    packed = pack_params(params)

    act_dtype = _default_act_dtype()
    fwd = jax.jit(functools.partial(autoencoder3d_forward, space_dim=space_dim,
                                    act_dtype=act_dtype))
    y = fwd(x, packed)
    jax.block_until_ready(y)

    y_ref = reference_forward(x, params, space_dim, act_dtype=act_dtype)
    assert y.shape == (batch, D_in, space_dim), y.shape
    assert jnp.allclose(y, y_ref, atol=2e-3, rtol=2e-3), "batched mismatch vs reference"

    # single-sample path, matching the original module's forward(x)
    y1 = autoencoder3d_forward(x[0], packed, space_dim=space_dim,
                               act_dtype=act_dtype)
    jax.block_until_ready(y1)
    assert y1.shape == (D_in, space_dim), y1.shape
    assert jnp.allclose(y1, y_ref[0], atol=2e-3, rtol=2e-3), "single-sample mismatch"

    print("KERNEL_OK")
</pallas_src>

<mosaic_0001>
module attributes {stable_mosaic.version = 11 : i64} {
  func.func @autoencoder3d_kernel(%arg0: i32, %arg1: memref<128x48xf32, #tpu.memory_space<vmem>>, %arg2: memref<48x128xbf16, #tpu.memory_space<vmem>>, %arg3: memref<6x128x128xbf16, #tpu.memory_space<vmem>>, %arg4: memref<128x128xbf16, #tpu.memory_space<vmem>>, %arg5: memref<8x128xf32, #tpu.memory_space<vmem>>, %arg6: memref<1x128xf32, #tpu.memory_space<vmem>>, %arg7: memref<128x128xf32, #tpu.memory_space<vmem>>) attributes {dimension_semantics = [#tpu.dimension_semantics<parallel>], iteration_bounds = array<i64: 2>, scalar_prefetch = 0 : i64, scratch_operands = 0 : i64, tpu.core_type = #tpu.core_type<tc>, window_params = [{transform_indices = @transform_0, window_bounds = array<i64: 128, 48>}, {pipeline_mode = #tpu.pipeline_mode<synchronous>, transform_indices = @transform_1, window_bounds = array<i64: 48, 128>}, {pipeline_mode = #tpu.pipeline_mode<synchronous>, transform_indices = @transform_2, window_bounds = array<i64: 6, 128, 128>}, {pipeline_mode = #tpu.pipeline_mode<synchronous>, transform_indices = @transform_3, window_bounds = array<i64: 128, 128>}, {pipeline_mode = #tpu.pipeline_mode<synchronous>, transform_indices = @transform_4, window_bounds = array<i64: 8, 128>}, {pipeline_mode = #tpu.pipeline_mode<synchronous>, transform_indices = @transform_5, window_bounds = array<i64: 1, 128>}, {transform_indices = @transform_6, window_bounds = array<i64: 128, 128>}]} {
    %c0 = arith.constant 0 : index
    %c0_0 = arith.constant 0 : index
    %0 = vector.load %arg1[%c0, %c0_0] : memref<128x48xf32, #tpu.memory_space<vmem>>, vector<128x48xf32>
    %c0_1 = arith.constant 0 : index
    %c0_2 = arith.constant 0 : index
    %1 = vector.load %arg2[%c0_1, %c0_2] : memref<48x128xbf16, #tpu.memory_space<vmem>>, vector<48x128xbf16>
    %c0_3 = arith.constant 0 : index
    %c0_4 = arith.constant 0 : index
    %2 = vector.load %arg5[%c0_3, %c0_4] : memref<8x128xf32, #tpu.memory_space<vmem>>, vector<1x128xf32>
    %3 = arith.truncf %0 : vector<128x48xf32> to vector<128x48xbf16>
    %cst = arith.constant dense<0.000000e+00> : vector<128x128xf32>
    %4 = tpu.matmul %3, %1, %cst {dimension_numbers = #tpu.dot_dimension_numbers<[1], [0], [0], [1], [0, 0, 1, 1], [], []>} : vector<128x48xbf16>, vector<48x128xbf16>, vector<128x128xf32> -> vector<128x128xf32>
    %5 = vector.broadcast %2 : vector<1x128xf32> to vector<128x128xf32>
    %6 = arith.addf %4, %5 : vector<128x128xf32>
    %cst_5 = arith.constant 0.000000e+00 : f32
    %7 = vector.broadcast %cst_5 : f32 to vector<128x128xf32>
    %8 = arith.maximumf %6, %7 : vector<128x128xf32>
    %c0_6 = arith.constant 0 : index
    %c0_7 = arith.constant 0 : index
    %c0_8 = arith.constant 0 : index
    %9 = vector.load %arg3[%c0_6, %c0_7, %c0_8] : memref<6x128x128xbf16, #tpu.memory_space<vmem>>, vector<1x128x128xbf16>
    %10 = vector.shape_cast %9 : vector<1x128x128xbf16> to vector<128x128xbf16>
    %c1 = arith.constant 1 : index
    %c0_9 = arith.constant 0 : index
    %11 = vector.load %arg5[%c1, %c0_9] : memref<8x128xf32, #tpu.memory_space<vmem>>, vector<1x128xf32>
    %12 = arith.truncf %8 : vector<128x128xf32> to vector<128x128xbf16>
    %cst_10 = arith.constant dense<0.000000e+00> : vector<128x128xf32>
    %13 = tpu.matmul %12, %10, %cst_10 {dimension_numbers = #tpu.dot_dimension_numbers<[1], [0], [0], [1], [0, 0, 1, 1], [], []>} : vector<128x128xbf16>, vector<128x128xbf16>, vector<128x128xf32> -> vector<128x128xf32>
    %14 = vector.broadcast %11 : vector<1x128xf32> to vector<128x128xf32>
    %15 = arith.addf %13, %14 : vector<128x128xf32>
    %cst_11 = arith.constant 0.000000e+00 : f32
    %16 = vector.broadcast %cst_11 : f32 to vector<128x128xf32>
    %17 = arith.maximumf %15, %16 : vector<128x128xf32>
    %c1_12 = arith.constant 1 : index
    %c0_13 = arith.constant 0 : index
    %c0_14 = arith.constant 0 : index
    %18 = vector.load %arg3[%c1_12, %c0_13, %c0_14] : memref<6x128x128xbf16, #tpu.memory_space<vmem>>, vector<1x128x128xbf16>
    %19 = vector.shape_cast %18 : vector<1x128x128xbf16> to vector<128x128xbf16>
    %c2 = arith.constant 2 : index
    %c0_15 = arith.constant 0 : index
    %20 = vector.load %arg5[%c2, %c0_15] : memref<8x128xf32, #tpu.memory_space<vmem>>, vector<1x128xf32>
    %21 = arith.truncf %17 : vector<128x128xf32> to vector<128x128xbf16>
    %cst_16 = arith.constant dense<0.000000e+00> : vector<128x128xf32>
    %22 = tpu.matmul %21, %19, %cst_16 {dimension_numbers = #tpu.dot_dimension_numbers<[1], [0], [0], [1], [0, 0, 1, 1], [], []>} : vector<128x128xbf16>, vector<128x128xbf16>, vector<128x128xf32> -> vector<128x128xf32>
    %23 = vector.broadcast %20 : vector<1x128xf32> to vector<128x128xf32>
    %24 = arith.addf %22, %23 : vector<128x128xf32>
    %cst_17 = arith.constant 0.000000e+00 : f32
    %25 = vector.broadcast %cst_17 : f32 to vector<128x128xf32>
    %26 = arith.maximumf %24, %25 : vector<128x128xf32>
    %c2_18 = arith.constant 2 : index
    %c0_19 = arith.constant 0 : index
    %c0_20 = arith.constant 0 : index
    %27 = vector.load %arg3[%c2_18, %c0_19, %c0_20] : memref<6x128x128xbf16, #tpu.memory_space<vmem>>, vector<1x128x128xbf16>
    %28 = vector.shape_cast %27 : vector<1x128x128xbf16> to vector<128x128xbf16>
    %c3 = arith.constant 3 : index
    %c0_21 = arith.constant 0 : index
    %29 = vector.load %arg5[%c3, %c0_21] : memref<8x128xf32, #tpu.memory_space<vmem>>, vector<1x128xf32>
    %30 = arith.truncf %26 : vector<128x128xf32> to vector<128x128xbf16>
    %cst_22 = arith.constant dense<0.000000e+00> : vector<128x128xf32>
    %31 = tpu.matmul %30, %28, %cst_22 {dimension_numbers = #tpu.dot_dimension_numbers<[1], [0], [0], [1], [0, 0, 1, 1], [], []>} : vector<128x128xbf16>, vector<128x128xbf16>, vector<128x128xf32> -> vector<128x128xf32>
    %32 = vector.broadcast %29 : vector<1x128xf32> to vector<128x128xf32>
    %33 = arith.addf %31, %32 : vector<128x128xf32>
    %cst_23 = arith.constant 0.000000e+00 : f32
    %34 = vector.broadcast %cst_23 : f32 to vector<128x128xf32>
    %35 = arith.maximumf %33, %34 : vector<128x128xf32>
    %c3_24 = arith.constant 3 : index
    %c0_25 = arith.constant 0 : index
    %c0_26 = arith.constant 0 : index
    %36 = vector.load %arg3[%c3_24, %c0_25, %c0_26] : memref<6x128x128xbf16, #tpu.memory_space<vmem>>, vector<1x128x128xbf16>
    %37 = vector.shape_cast %36 : vector<1x128x128xbf16> to vector<128x128xbf16>
    %c4 = arith.constant 4 : index
    %c0_27 = arith.constant 0 : index
    %38 = vector.load %arg5[%c4, %c0_27] : memref<8x128xf32, #tpu.memory_space<vmem>>, vector<1x128xf32>
    %39 = arith.truncf %35 : vector<128x128xf32> to vector<128x128xbf16>
    %cst_28 = arith.constant dense<0.000000e+00> : vector<128x128xf32>
    %40 = tpu.matmul %39, %37, %cst_28 {dimension_numbers = #tpu.dot_dimension_numbers<[1], [0], [0], [1], [0, 0, 1, 1], [], []>} : vector<128x128xbf16>, vector<128x128xbf16>, vector<128x128xf32> -> vector<128x128xf32>
    %41 = vector.broadcast %38 : vector<1x128xf32> to vector<128x128xf32>
    %42 = arith.addf %40, %41 : vector<128x128xf32>
    %cst_29 = arith.constant 0.000000e+00 : f32
    %43 = vector.broadcast %cst_29 : f32 to vector<128x128xf32>
    %44 = arith.maximumf %42, %43 : vector<128x128xf32>
    %c4_30 = arith.constant 4 : index
    %c0_31 = arith.constant 0 : index
    %c0_32 = arith.constant 0 : index
    %45 = vector.load %arg3[%c4_30, %c0_31, %c0_32] : memref<6x128x128xbf16, #tpu.memory_space<vmem>>, vector<1x128x128xbf16>
    %46 = vector.shape_cast %45 : vector<1x128x128xbf16> to vector<128x128xbf16>
    %c5 = arith.constant 5 : index
    %c0_33 = arith.constant 0 : index
    %47 = vector.load %arg5[%c5, %c0_33] : memref<8x128xf32, #tpu.memory_space<vmem>>, vector<1x128xf32>
    %48 = arith.truncf %44 : vector<128x128xf32> to vector<128x128xbf16>
    %cst_34 = arith.constant dense<0.000000e+00> : vector<128x128xf32>
    %49 = tpu.matmul %48, %46, %cst_34 {dimension_numbers = #tpu.dot_dimension_numbers<[1], [0], [0], [1], [0, 0, 1, 1], [], []>} : vector<128x128xbf16>, vector<128x128xbf16>, vector<128x128xf32> -> vector<128x128xf32>
    %50 = vector.broadcast %47 : vector<1x128xf32> to vector<128x128xf32>
    %51 = arith.addf %49, %50 : vector<128x128xf32>
    %cst_35 = arith.constant 0.000000e+00 : f32
    %52 = vector.broadcast %cst_35 : f32 to vector<128x128xf32>
    %53 = arith.maximumf %51, %52 : vector<128x128xf32>
    %c5_36 = arith.constant 5 : index
    %c0_37 = arith.constant 0 : index
    %c0_38 = arith.constant 0 : index
    %54 = vector.load %arg3[%c5_36, %c0_37, %c0_38] : memref<6x128x128xbf16, #tpu.memory_space<vmem>>, vector<1x128x128xbf16>
    %55 = vector.shape_cast %54 : vector<1x128x128xbf16> to vector<128x128xbf16>
    %c6 = arith.constant 6 : index
    %c0_39 = arith.constant 0 : index
    %56 = vector.load %arg5[%c6, %c0_39] : memref<8x128xf32, #tpu.memory_space<vmem>>, vector<1x128xf32>
    %57 = arith.truncf %53 : vector<128x128xf32> to vector<128x128xbf16>
    %cst_40 = arith.constant dense<0.000000e+00> : vector<128x128xf32>
    %58 = tpu.matmul %57, %55, %cst_40 {dimension_numbers = #tpu.dot_dimension_numbers<[1], [0], [0], [1], [0, 0, 1, 1], [], []>} : vector<128x128xbf16>, vector<128x128xbf16>, vector<128x128xf32> -> vector<128x128xf32>
    %59 = vector.broadcast %56 : vector<1x128xf32> to vector<128x128xf32>
    %60 = arith.addf %58, %59 : vector<128x128xf32>
    %cst_41 = arith.constant 0.000000e+00 : f32
    %61 = vector.broadcast %cst_41 : f32 to vector<128x128xf32>
    %62 = arith.maximumf %60, %61 : vector<128x128xf32>
    %c0_42 = arith.constant 0 : index
    %c0_43 = arith.constant 0 : index
    %63 = vector.load %arg4[%c0_42, %c0_43] : memref<128x128xbf16, #tpu.memory_space<vmem>>, vector<128x128xbf16>
    %c0_44 = arith.constant 0 : index
    %c0_45 = arith.constant 0 : index
    %64 = vector.load %arg6[%c0_44, %c0_45] : memref<1x128xf32, #tpu.memory_space<vmem>>, vector<1x128xf32>
    %65 = arith.truncf %62 : vector<128x128xf32> to vector<128x128xbf16>
    %cst_46 = arith.constant dense<0.000000e+00> : vector<128x128xf32>
    %66 = tpu.matmul %65, %63, %cst_46 {dimension_numbers = #tpu.dot_dimension_numbers<[1], [0], [0], [1], [0, 0, 1, 1], [], []>} : vector<128x128xbf16>, vector<128x128xbf16>, vector<128x128xf32> -> vector<128x128xf32>
    %67 = vector.broadcast %64 : vector<1x128xf32> to vector<128x128xf32>
    %68 = arith.addf %66, %67 : vector<128x128xf32>
    %69 = math.tanh %68 : vector<128x128xf32>
    %c0_47 = arith.constant 0 : index
    %c0_48 = arith.constant 0 : index
    %70 = vector.load %arg7[%c0_47, %c0_48] : memref<128x128xf32, #tpu.memory_space<vmem>>, vector<128x128xf32>
    tpu.vector_store %arg7[%c0_47, %c0_48], %69 {strides = array<i32>} : memref<128x128xf32, #tpu.memory_space<vmem>>, vector<128x128xf32>,
    return
  }
  func.func @transform_0(%arg0: i32) -> (i32, i32) {
    %c0_i32 = arith.constant 0 : i32
    %c0_i32_0 = arith.constant 0 : i32
    return %arg0, %c0_i32 : i32, i32
  }
  func.func @transform_1(%arg0: i32) -> (i32, i32) {
    %c0_i32 = arith.constant 0 : i32
    %c0_i32_0 = arith.constant 0 : i32
    %c0_i32_1 = arith.constant 0 : i32
    return %c0_i32, %c0_i32_0 : i32, i32
  }
  func.func @transform_2(%arg0: i32) -> (i32, i32, i32) {
    %c0_i32 = arith.constant 0 : i32
    %c0_i32_0 = arith.constant 0 : i32
    %c0_i32_1 = arith.constant 0 : i32
    %c0_i32_2 = arith.constant 0 : i32
    return %c0_i32, %c0_i32_0, %c0_i32_1 : i32, i32, i32
  }
  func.func @transform_3(%arg0: i32) -> (i32, i32) {
    %c0_i32 = arith.constant 0 : i32
    %c0_i32_0 = arith.constant 0 : i32
    %c0_i32_1 = arith.constant 0 : i32
    return %c0_i32, %c0_i32_0 : i32, i32
  }
  func.func @transform_4(%arg0: i32) -> (i32, i32) {
    %c0_i32 = arith.constant 0 : i32
    %c0_i32_0 = arith.constant 0 : i32
    %c0_i32_1 = arith.constant 0 : i32
    return %c0_i32, %c0_i32_0 : i32, i32
  }
  func.func @transform_5(%arg0: i32) -> (i32, i32) {
    %c0_i32 = arith.constant 0 : i32
    %c0_i32_0 = arith.constant 0 : i32
    %c0_i32_1 = arith.constant 0 : i32
    return %c0_i32, %c0_i32_0 : i32, i32
  }
  func.func @transform_6(%arg0: i32) -> (i32, i32) {
    %c0_i32 = arith.constant 0 : i32
    %c0_i32_0 = arith.constant 0 : i32
    return %arg0, %c0_i32 : i32, i32
  }
}

</mosaic_0001>

<llo_original>
// kernel: autoencoder3d_forward.1
$region0: #{autoencoder3d_forward.1}
  #allocation0 [shape = 'u32[]', space=smem, size = 0x4, offset = 0x4, fixed_abs, tag = 'smem constant byte address 0x4 - core index']
  #allocation1 [shape = 'u32[72,128]{1,0:T(1,128)}', space=vmem, size = 0x9000, scoped, tag = 'internal scratch']
  %s0 = inlined_call_operand.vmem [shape: f32[256,48], index: 0, kind: input, shape index: {}]
  %s1 = inlined_call_operand.vmem [shape: bf16[48,128], index: 1, kind: input, shape index: {}]
  %s2 = inlined_call_operand.vmem [shape: bf16[6,128,128], index: 2, kind: input, shape index: {}]
  %s3 = inlined_call_operand.vmem [shape: bf16[128,128], index: 3, kind: input, shape index: {}]
  %s4 = inlined_call_operand.vmem [shape: f32[8,128], index: 4, kind: input, shape index: {}]
  %s5 = inlined_call_operand.vmem [shape: f32[1,128], index: 5, kind: input, shape index: {}]
  %s6 = inlined_call_operand.vmem [shape: f32[256,128], index: 6, kind: output, shape index: {}]
  %s7 = sld [smem:[#allocation0]]
  $region57: #{autoencoder3d_forward.1} parent=0
    _
  %s9 = ssub.s32 1, %s7
  %s10 = scalar_select 0, %s9, %s7
  loop: start=0, step=1, limit=4
  $region2: #{autoencoder3d_forward.1} parent=0 // loop_pre_header
    _
  $region3: #{autoencoder3d_forward.1} parent=0 // loop_header
    %s12 = sphi 0, %s16
    %p13 = scmp.ge.s32.totalorder %s12, 4
    %s22 = sphi 0, %s24
    %s25 = sphi 0, %s22
    %s26 = sphi 0, %s25
    %s42 = sphi 0, %s26
    %s46 = sphi 0, %s46
    %s48 = sphi 0, %s46
    %s49 = sphi 0, %s48
    %s63 = sphi 0, %s49
    %s67 = sphi 0, %s67
    %s69 = sphi 0, %s67
    %s70 = sphi 0, %s69
    %s84 = sphi 0, %s70
    %s88 = sphi 0, %s88
    %s90 = sphi 0, %s88
    %s91 = sphi 0, %s90
    %s105 = sphi 0, %s91
    %s109 = sphi 0, %s109
    %s111 = sphi 0, %s109
    %s112 = sphi 0, %s111
    %s126 = sphi 0, %s112
    %s130 = sphi 0, %s130
    %s132 = sphi 0, %s130
    %s133 = sphi 0, %s132
    %s147 = sphi 0, %s133
    %s153 = sphi 0, %s155
    %s156 = sphi 0, %s153
    %s157 = sphi 0, %s156
    %s173 = sphi 0, %s157
  $region4: #{autoencoder3d_forward.1} parent=0 // loop_header_branch
    %15 = sbr.rel (%p13) target = $region8
  $region5: #{autoencoder3d_forward.1} parent=0 // loop_body
    %s17 = ssub.s32 %s12, 1
    %s18 = ssub.s32 %s12, 2
    %s19 = sadd.s32 %s12, 1
    %s20 = ssub.s32 %s12, %s19
    %p21 = scmp.eq.s32.totalorder %s20, 0
    %s23 = sadd.s32 %s22, 1
    %s24 = scalar_select %p21, %s22, %s23
    %p27 = pneg %p21
    %p28 = scmp.eq.s32.totalorder %s12, 1
    %p29 = por %p27, %p28
    %p30 = scmp.ne.s32.totalorder %s22, %s25
    %p31 = scmp.eq.s32.totalorder %s12, 0
    %p32 = por %p30, %p31
    %p33 = scmp.ne.s32.totalorder %s22, %s25
    %p34 = scmp.eq.s32.totalorder %s17, 1
    %p35 = por %p33, %p34
    %p36 = scmp.ne.s32.totalorder %s25, %s26
    %p37 = scmp.eq.s32.totalorder %s17, 0
    %p38 = por %p36, %p37
    %p39 = scmp.ne.s32.totalorder %s25, %s26
    %p40 = scmp.eq.s32.totalorder %s18, 1
    %p41 = por %p39, %p40
    %p43 = scmp.ne.s32.totalorder %s26, %s42
    %p44 = scmp.eq.s32.totalorder %s18, 0
    %p45 = por %p43, %p44
    %s47 = sadd.s32 %s46, 1
    %p50 = scmp.eq.s32.totalorder %s12, 1
    %p51 = scmp.ne.s32.totalorder %s46, %s48
    %p52 = scmp.eq.s32.totalorder %s12, 0
    %p53 = por %p51, %p52
    %p54 = scmp.ne.s32.totalorder %s46, %s48
    %p55 = scmp.eq.s32.totalorder %s17, 1
    %p56 = por %p54, %p55
    %p57 = scmp.ne.s32.totalorder %s48, %s49
    %p58 = scmp.eq.s32.totalorder %s17, 0
    %p59 = por %p57, %p58
    %p60 = scmp.ne.s32.totalorder %s48, %s49
    %p61 = scmp.eq.s32.totalorder %s18, 1
    %p62 = por %p60, %p61
    %p64 = scmp.ne.s32.totalorder %s49, %s63
    %p65 = scmp.eq.s32.totalorder %s18, 0
    %p66 = por %p64, %p65
    %s68 = sadd.s32 %s67, 1
    %p71 = scmp.eq.s32.totalorder %s12, 1
    %p72 = scmp.ne.s32.totalorder %s67, %s69
    %p73 = scmp.eq.s32.totalorder %s12, 0
    %p74 = por %p72, %p73
    %p75 = scmp.ne.s32.totalorder %s67, %s69
    %p76 = scmp.eq.s32.totalorder %s17, 1
    %p77 = por %p75, %p76
    %p78 = scmp.ne.s32.totalorder %s69, %s70
    %p79 = scmp.eq.s32.totalorder %s17, 0
    %p80 = por %p78, %p79
    %p81 = scmp.ne.s32.totalorder %s69, %s70
    %p82 = scmp.eq.s32.totalorder %s18, 1
    %p83 = por %p81, %p82
    %p85 = scmp.ne.s32.totalorder %s70, %s84
    %p86 = scmp.eq.s32.totalorder %s18, 0
    %p87 = por %p85, %p86
    %s89 = sadd.s32 %s88, 1
    %p92 = scmp.eq.s32.totalorder %s12, 1
    %p93 = scmp.ne.s32.totalorder %s88, %s90
    %p94 = scmp.eq.s32.totalorder %s12, 0
    %p95 = por %p93, %p94
    %p96 = scmp.ne.s32.totalorder %s88, %s90
    %p97 = scmp.eq.s32.totalorder %s17, 1
    %p98 = por %p96, %p97
    %p99 = scmp.ne.s32.totalorder %s90, %s91
    %p100 = scmp.eq.s32.totalorder %s17, 0
    %p101 = por %p99, %p100
    %p102 = scmp.ne.s32.totalorder %s90, %s91
    %p103 = scmp.eq.s32.totalorder %s18, 1
    %p104 = por %p102, %p103
    %p106 = scmp.ne.s32.totalorder %s91, %s105
    %p107 = scmp.eq.s32.totalorder %s18, 0
    %p108 = por %p106, %p107
    %s110 = sadd.s32 %s109, 1
    %p113 = scmp.eq.s32.totalorder %s12, 1
    %p114 = scmp.ne.s32.totalorder %s109, %s111
    %p115 = scmp.eq.s32.totalorder %s12, 0
    %p116 = por %p114, %p115
    %p117 = scmp.ne.s32.totalorder %s109, %s111
    %p118 = scmp.eq.s32.totalorder %s17, 1
    %p119 = por %p117, %p118
    %p120 = scmp.ne.s32.totalorder %s111, %s112
    %p121 = scmp.eq.s32.totalorder %s17, 0
    %p122 = por %p120, %p121
    %p123 = scmp.ne.s32.totalorder %s111, %s112
    %p124 = scmp.eq.s32.totalorder %s18, 1
    %p125 = por %p123, %p124
    %p127 = scmp.ne.s32.totalorder %s112, %s126
    %p128 = scmp.eq.s32.totalorder %s18, 0
    %p129 = por %p127, %p128
    %s131 = sadd.s32 %s130, 1
    %p134 = scmp.eq.s32.totalorder %s12, 1
    %p135 = scmp.ne.s32.totalorder %s130, %s132
    %p136 = scmp.eq.s32.totalorder %s12, 0
    %p137 = por %p135, %p136
    %p138 = scmp.ne.s32.totalorder %s130, %s132
    %p139 = scmp.eq.s32.totalorder %s17, 1
    %p140 = por %p138, %p139
    %p141 = scmp.ne.s32.totalorder %s132, %s133
    %p142 = scmp.eq.s32.totalorder %s17, 0
    %p143 = por %p141, %p142
    %p144 = scmp.ne.s32.totalorder %s132, %s133
    %p145 = scmp.eq.s32.totalorder %s18, 1
    %p146 = por %p144, %p145
    %p148 = scmp.ne.s32.totalorder %s133, %s147
    %p149 = scmp.eq.s32.totalorder %s18, 0
    %p150 = por %p148, %p149
    %s151 = ssub.s32 %s12, %s19
    %p152 = scmp.eq.s32.totalorder %s151, 0
    %s154 = sadd.s32 %s153, 1
    %s155 = scalar_select %p152, %s153, %s154
    %p158 = pneg %p152
    %p159 = scmp.eq.s32.totalorder %s12, 1
    %p160 = por %p158, %p159
    %p161 = scmp.ne.s32.totalorder %s153, %s156
    %p162 = scmp.eq.s32.totalorder %s12, 0
    %p163 = por %p161, %p162
    %p164 = scmp.ne.s32.totalorder %s153, %s156
    %p165 = scmp.eq.s32.totalorder %s17, 1
    %p166 = por %p164, %p165
    %p167 = scmp.ne.s32.totalorder %s156, %s157
    %p168 = scmp.eq.s32.totalorder %s17, 0
    %p169 = por %p167, %p168
    %p170 = scmp.ne.s32.totalorder %s156, %s157
    %p171 = scmp.eq.s32.totalorder %s18, 1
    %p172 = por %p170, %p171
    %p174 = scmp.ne.s32.totalorder %s157, %s173
    %p175 = scmp.eq.s32.totalorder %s18, 0
    %p176 = por %p174, %p175
    %p177 = scmp.le.s32.totalorder 1, %s12
    %p178 = scmp.lt.s32.totalorder %s12, 3
    %p179 = pnand %p177, %p178
    %p180 = pneg %p179
    // Predicated region
    $region9: #{autoencoder3d_forward.1} parent=5 // pred_check
      _
    $region10: #{autoencoder3d_forward.1} parent=5 // pred_check_branch
      %182 = sbr.rel (%p179) target = $region12
    $region11: #{autoencoder3d_forward.1} parent=5 // pred_region
      %s183 = ssub.s32 %s12, 1
      // Predicated region
      $region13: #{autoencoder3d_forward.1} parent=11 // pred_check
        %p184 = pneg %p59
      $region14: #{autoencoder3d_forward.1} parent=11 // pred_check_branch
        %186 = sbr.rel (%p184) target = $region16
      $region15: #{autoencoder3d_forward.1} parent=11 // pred_region
        _
      $region16: #{autoencoder3d_forward.1} parent=11 // pred_fallthru
        _
      // Predicated region
      $region17: #{autoencoder3d_forward.1} parent=11 // pred_check
        %p187 = pneg %p80
      $region18: #{autoencoder3d_forward.1} parent=11 // pred_check_branch
        %189 = sbr.rel (%p187) target = $region20
      $region19: #{autoencoder3d_forward.1} parent=11 // pred_region
        _
      $region20: #{autoencoder3d_forward.1} parent=11 // pred_fallthru
        _
      // Predicated region
      $region21: #{autoencoder3d_forward.1} parent=11 // pred_check
        %p190 = pneg %p101
      $region22: #{autoencoder3d_forward.1} parent=11 // pred_check_branch
        %192 = sbr.rel (%p190) target = $region24
      $region23: #{autoencoder3d_forward.1} parent=11 // pred_region
        _
      $region24: #{autoencoder3d_forward.1} parent=11 // pred_fallthru
        _
      // Predicated region
      $region25: #{autoencoder3d_forward.1} parent=11 // pred_check
        %p193 = pneg %p122
      $region26: #{autoencoder3d_forward.1} parent=11 // pred_check_branch
        %195 = sbr.rel (%p193) target = $region28
      $region27: #{autoencoder3d_forward.1} parent=11 // pred_region
        _
      $region28: #{autoencoder3d_forward.1} parent=11 // pred_fallthru
        _
      // Predicated region
      $region29: #{autoencoder3d_forward.1} parent=11 // pred_check
        %p196 = pneg %p143
      $region30: #{autoencoder3d_forward.1} parent=11 // pred_check_branch
        %198 = sbr.rel (%p196) target = $region32
      $region31: #{autoencoder3d_forward.1} parent=11 // pred_region
        _
      $region32: #{autoencoder3d_forward.1} parent=11 // pred_fallthru
        _
    $region12: #{autoencoder3d_forward.1} parent=5 // pred_fallthru
      _
    %p199 = scmp.lt.s32.totalorder %s12, 2
    // Predicated region
    $region33: #{autoencoder3d_forward.1} parent=5 // pred_check
      %p200 = pneg %p199
    $region34: #{autoencoder3d_forward.1} parent=5 // pred_check_branch
      %202 = sbr.rel (%p200) target = $region36
    $region35: #{autoencoder3d_forward.1} parent=5 // pred_region
      // Predicated region
      $region37: #{autoencoder3d_forward.1} parent=35 // pred_check
        %p203 = pneg %p32
      $region38: #{autoencoder3d_forward.1} parent=35 // pred_check_branch
        %205 = sbr.rel (%p203) target = $region40
      $region39: #{autoencoder3d_forward.1} parent=35 // pred_region
        %s206 = smul.u32 16, %s12
        %p207 = scmp.lt.s32.totalorder %s206, 31
        %s208 = scalar_select %p207, %s206, 31
        %s209 = smul.addr %s208, 8
        %s210 = scalar_lea.vmem %s0, %s209
        %s211 = smul.u32 16, %s12
      $region40: #{autoencoder3d_forward.1} parent=35 // pred_fallthru
        _
    $region36: #{autoencoder3d_forward.1} parent=5 // pred_fallthru
      _
    %p212 = scmp.le.s32.totalorder 1, %s12
    %p213 = scmp.lt.s32.totalorder %s12, 3
    %p214 = pnand %p212, %p213
    %p215 = pneg %p214
    // Predicated region
    $region41: #{autoencoder3d_forward.1} parent=5 // pred_check
      _
    $region42: #{autoencoder3d_forward.1} parent=5 // pred_check_branch
      %217 = sbr.rel (%p214) target = $region44
    $region43: #{autoencoder3d_forward.1} parent=5 // pred_region
      %s218 = ssub.s32 %s12, 1
      %s219 = smul.u32 16, %s17
      %p220 = scmp.lt.s32.totalorder %s219, 31
      %s221 = scalar_select %p220, %s219, 31
      %s222 = smul.addr %s221, 8
      %s223 = scalar_lea.vmem %s0, %s222
      %p224 = pneg %p38
      %p225 = pneg %p35
      %p226 = pneg %p59
      %p227 = pneg %p56
      %p228 = pneg %p80
      %p229 = pneg %p77
      %p230 = pneg %p101
      %p231 = pneg %p98
      %p232 = pneg %p122
      %p233 = pneg %p119
      %p234 = pneg %p143
      %p235 = pneg %p140
      %p236 = pneg %p169
      %p237 = pneg %p166
      %s238 = smul.u32 16, %s17
      %p239 = scmp.lt.s32.totalorder %s238, 31
      %s240 = scalar_select %p239, %s238, 31
      %s241 = smul.addr %s240, 8
      %s242 = scalar_lea.vmem %s6, %s241
      %s243 = smul.u32 16, %s17
      %p244 = scmp.lt.s32.totalorder %s243, 31
      %s245 = scalar_select %p244, %s243, 31
      %s246 = smul.addr %s245, 8
      %s247 = scalar_lea.vmem %s0, %s246
      %s248 = smul.u32 16, %s17
      %s249 = smul.u32 16, %s17
      %p250 = scmp.lt.s32.totalorder %s249, 31
      %s251 = scalar_select %p250, %s249, 31
      %s252 = smul.addr %s251, 8
      %s253 = scalar_lea.vmem %s6, %s252
      %s254 = smul.u32 16, %s17
      %v256 = vld [vmem:[%s247] sm:$0xff]
      %v257 = vld [vmem:[%s247 + $0x8] sm:$0xff]
      %v258 = vld [vmem:[%s247 + $0x10] sm:$0xff]
      %v259 = vld [vmem:[%s247 + $0x18] sm:$0xff]
      %v260 = vld [vmem:[%s247 + $0x20] sm:$0xff]
      %v261 = vld [vmem:[%s247 + $0x28] sm:$0xff]
      %v262 = vld [vmem:[%s247 + $0x30] sm:$0xff]
      %v263 = vld [vmem:[%s247 + $0x38] sm:$0xff]
      %v264 = vld [vmem:[%s247 + $0x40] sm:$0xff]
      %v265 = vld [vmem:[%s247 + $0x48] sm:$0xff]
      %v266 = vld [vmem:[%s247 + $0x50] sm:$0xff]
      %v267 = vld [vmem:[%s247 + $0x58] sm:$0xff]
      %v268 = vld [vmem:[%s247 + $0x60] sm:$0xff]
      %v269 = vld [vmem:[%s247 + $0x68] sm:$0xff]
      %v270 = vld [vmem:[%s247 + $0x70] sm:$0xff]
      %v271 = vld [vmem:[%s247 + $0x78] sm:$0xff]
      %v272 = vld [vmem:[%s1] sm:$0xf]
      %v273 = vld [vmem:[%s1 + $0x4] sm:$0xf]
      %v274 = vld [vmem:[%s1 + $0x8] sm:$0xf]
      %v275 = vld [vmem:[%s1 + $0xc] sm:$0xf]
      %v276 = vld [vmem:[%s1 + $0x10] sm:$0xf]
      %v277 = vld [vmem:[%s1 + $0x14] sm:$0xf]
      %v278 = vld [vmem:[%s4] sm:$0x1]
      %v279 = vpack.c.bf16 %v257, %v256
      %v280 = vpack.c.bf16 %v259, %v258
      %v281 = vpack.c.bf16 %v261, %v260
      %v282 = vpack.c.bf16 %v263, %v262
      %v283 = vpack.c.bf16 %v265, %v264
      %v284 = vpack.c.bf16 %v267, %v266
      %v285 = vpack.c.bf16 %v269, %v268
      %v286 = vpack.c.bf16 %v271, %v270
      %v287 = vperm.slane %v278, 0
      %v294 = vunpack.c.l.b16 %v272
      %v295 = vunpack.c.l.b16 %v273
      %v296 = vunpack.c.l.b16 %v274
      %v297 = vunpack.c.l.b16 %v275
      %v298 = vunpack.c.l.b16 %v276
      %v299 = vunpack.c.l.b16 %v277
      %v300 = vpack.c.b16 %v295, %v294
      %v301 = vpack.c.b16 %v297, %v296
      %v302 = vpack.c.b16 %v299, %v298
      %vm306 = vcmask 392192
      %v308 = vsel %vm306, %v279, 0
      %v311 = vsel %vm306, %v280, 0
      %v314 = vsel %vm306, %v281, 0
      %v317 = vsel %vm306, %v282, 0
      %v320 = vsel %vm306, %v283, 0
      %v323 = vsel %vm306, %v284, 0
      %v326 = vsel %vm306, %v285, 0
      %v329 = vsel %vm306, %v286, 0
      %331 = vmatpush.bf16.msra.mxu0 0
      %332 = vmatpush.bf16.msra.mxu0 0
      %333 = vmatpush.bf16.msra.mxu0 0
      %334 = vmatpush.bf16.msra.mxu0 0
      %335 = vmatpush.bf16.msra.mxu0 0
      %336 = vmatpush.bf16.msra.mxu0 %v302
      %337 = vmatpush.bf16.msra.mxu0 %v301
      %338 = vmatpush.bf16.msra.mxu0 %v300
      %339 = vmatmul.bf16.gmra.mxu0 %v308
      %v340 = vpop.f32.mrf.mxu0
      %v341 = vadd.f32 %v287, %v340
      %v342 = vpop.f32.mrf.mxu0
      %v343 = vadd.f32 %v287, %v342
      %344 = vmatmul.bf16.gmra.mxu0 %v311
      %v345 = vpop.f32.mrf.mxu0
      %v346 = vadd.f32 %v287, %v345
      %v347 = vpop.f32.mrf.mxu0
      %v348 = vadd.f32 %v287, %v347
      %349 = vmatmul.bf16.gmra.mxu0 %v314
      %v350 = vpop.f32.mrf.mxu0
      %v351 = vadd.f32 %v287, %v350
      %v352 = vpop.f32.mrf.mxu0
      %v353 = vadd.f32 %v287, %v352
      %354 = vmatmul.bf16.gmra.mxu0 %v317
      %v355 = vpop.f32.mrf.mxu0
      %v356 = vadd.f32 %v287, %v355
      %v357 = vpop.f32.mrf.mxu0
      %v358 = vadd.f32 %v287, %v357
      %359 = vmatmul.bf16.gmra.mxu0 %v320
      %v360 = vpop.f32.mrf.mxu0
      %v361 = vadd.f32 %v287, %v360
      %v362 = vpop.f32.mrf.mxu0
      %v363 = vadd.f32 %v287, %v362
      %364 = vmatmul.bf16.gmra.mxu0 %v323
      %v365 = vpop.f32.mrf.mxu0
      %v366 = vadd.f32 %v287, %v365
      %v367 = vpop.f32.mrf.mxu0
      %v368 = vadd.f32 %v287, %v367
      %369 = vmatmul.bf16.gmra.mxu0 %v326
      %v370 = vpop.f32.mrf.mxu0
      %v371 = vadd.f32 %v287, %v370
      %v372 = vpop.f32.mrf.mxu0
      %v373 = vadd.f32 %v287, %v372
      %374 = vmatmul.bf16.gmra.mxu0 %v329
      %v375 = vpop.f32.mrf.mxu0
      %v376 = vadd.f32 %v287, %v375
      %v377 = vpop.f32.mrf.mxu0
      %v378 = vadd.f32 %v287, %v377
      %379 = vdwg.mxu0
      %v380 = vmax.f32 %v341, 0.0
      %v381 = vmax.f32 %v343, 0.0
      %v382 = vmax.f32 %v346, 0.0
      %v383 = vmax.f32 %v348, 0.0
      %v384 = vmax.f32 %v351, 0.0
      %v385 = vmax.f32 %v353, 0.0
      %v386 = vmax.f32 %v356, 0.0
      %v387 = vmax.f32 %v358, 0.0
      %v388 = vmax.f32 %v361, 0.0
      %v389 = vmax.f32 %v363, 0.0
      %v390 = vmax.f32 %v366, 0.0
      %v391 = vmax.f32 %v368, 0.0
      %v392 = vmax.f32 %v371, 0.0
      %v393 = vmax.f32 %v373, 0.0
      %v394 = vmax.f32 %v376, 0.0
      %v395 = vmax.f32 %v378, 0.0
      %v396 = vld [vmem:[%s2] sm:$0xf]
      %v397 = vld [vmem:[%s2 + $0x4] sm:$0xf]
      %v398 = vld [vmem:[%s2 + $0x8] sm:$0xf]
      %v399 = vld [vmem:[%s2 + $0xc] sm:$0xf]
      %v400 = vld [vmem:[%s2 + $0x10] sm:$0xf]
      %v401 = vld [vmem:[%s2 + $0x14] sm:$0xf]
      %v402 = vld [vmem:[%s2 + $0x18] sm:$0xf]
      %v403 = vld [vmem:[%s2 + $0x1c] sm:$0xf]
      %v404 = vld [vmem:[%s2 + $0x20] sm:$0xf]
      %v405 = vld [vmem:[%s2 + $0x24] sm:$0xf]
      %v406 = vld [vmem:[%s2 + $0x28] sm:$0xf]
      %v407 = vld [vmem:[%s2 + $0x2c] sm:$0xf]
      %v408 = vld [vmem:[%s2 + $0x30] sm:$0xf]
      %v409 = vld [vmem:[%s2 + $0x34] sm:$0xf]
      %v410 = vld [vmem:[%s2 + $0x38] sm:$0xf]
      %v411 = vld [vmem:[%s2 + $0x3c] sm:$0xf]
      %v412 = vld [vmem:[%s4 + $0x1] sm:$0x1]
      %v413 = vpack.c.bf16 %v381, %v380
      %v414 = vpack.c.bf16 %v383, %v382
      %v415 = vpack.c.bf16 %v385, %v384
      %v416 = vpack.c.bf16 %v387, %v386
      %v417 = vpack.c.bf16 %v389, %v388
      %v418 = vpack.c.bf16 %v391, %v390
      %v419 = vpack.c.bf16 %v393, %v392
      %v420 = vpack.c.bf16 %v395, %v394
      %v421 = vperm.slane %v412, 0
      %v438 = vunpack.c.l.b16 %v396
      %v439 = vunpack.c.l.b16 %v397
      %v440 = vunpack.c.l.b16 %v398
      %v441 = vunpack.c.l.b16 %v399
      %v442 = vunpack.c.l.b16 %v400
      %v443 = vunpack.c.l.b16 %v401
      %v444 = vunpack.c.l.b16 %v402
      %v445 = vunpack.c.l.b16 %v403
      %v446 = vunpack.c.l.b16 %v404
      %v447 = vunpack.c.l.b16 %v405
      %v448 = vunpack.c.l.b16 %v406
      %v449 = vunpack.c.l.b16 %v407
      %v450 = vunpack.c.l.b16 %v408
      %v451 = vunpack.c.l.b16 %v409
      %v452 = vunpack.c.l.b16 %v410
      %v453 = vunpack.c.l.b16 %v411
      %v454 = vpack.c.b16 %v439, %v438
      %v455 = vpack.c.b16 %v441, %v440
      %v456 = vpack.c.b16 %v443, %v442
      %v457 = vpack.c.b16 %v445, %v444
      %v458 = vpack.c.b16 %v447, %v446
      %v459 = vpack.c.b16 %v449, %v448
      %v460 = vpack.c.b16 %v451, %v450
      %v461 = vpack.c.b16 %v453, %v452
      %470 = vmatpush.bf16.msra.mxu0 %v461
      %471 = vmatpush.bf16.msra.mxu0 %v460
      %472 = vmatpush.bf16.msra.mxu0 %v459
      %473 = vmatpush.bf16.msra.mxu0 %v458
      %474 = vmatpush.bf16.msra.mxu0 %v457
      %475 = vmatpush.bf16.msra.mxu0 %v456
      %476 = vmatpush.bf16.msra.mxu0 %v455
      %477 = vmatpush.bf16.msra.mxu0 %v454
      %478 = vmatmul.bf16.gmra.mxu0 %v413
      %v479 = vpop.f32.mrf.mxu0
      %v480 = vadd.f32 %v421, %v479
      %v481 = vpop.f32.mrf.mxu0
      %v482 = vadd.f32 %v421, %v481
      %483 = vmatmul.bf16.gmra.mxu0 %v414
      %v484 = vpop.f32.mrf.mxu0
      %v485 = vadd.f32 %v421, %v484
      %v486 = vpop.f32.mrf.mxu0
      %v487 = vadd.f32 %v421, %v486
      %488 = vmatmul.bf16.gmra.mxu0 %v415
      %v489 = vpop.f32.mrf.mxu0
      %v490 = vadd.f32 %v421, %v489
      %v491 = vpop.f32.mrf.mxu0
      %v492 = vadd.f32 %v421, %v491
      %493 = vmatmul.bf16.gmra.mxu0 %v416
      %v494 = vpop.f32.mrf.mxu0
      %v495 = vadd.f32 %v421, %v494
      %v496 = vpop.f32.mrf.mxu0
      %v497 = vadd.f32 %v421, %v496
      %498 = vmatmul.bf16.gmra.mxu0 %v417
      %v499 = vpop.f32.mrf.mxu0
      %v500 = vadd.f32 %v421, %v499
      %v501 = vpop.f32.mrf.mxu0
      %v502 = vadd.f32 %v421, %v501
      %503 = vmatmul.bf16.gmra.mxu0 %v418
      %v504 = vpop.f32.mrf.mxu0
      %v505 = vadd.f32 %v421, %v504
      %v506 = vpop.f32.mrf.mxu0
      %v507 = vadd.f32 %v421, %v506
      %508 = vmatmul.bf16.gmra.mxu0 %v419
      %v509 = vpop.f32.mrf.mxu0
      %v510 = vadd.f32 %v421, %v509
      %v511 = vpop.f32.mrf.mxu0
      %v512 = vadd.f32 %v421, %v511
      %513 = vmatmul.bf16.gmra.mxu0 %v420
      %v514 = vpop.f32.mrf.mxu0
      %v515 = vadd.f32 %v421, %v514
      %v516 = vpop.f32.mrf.mxu0
      %v517 = vadd.f32 %v421, %v516
      %518 = vdwg.mxu0
      %v519 = vmax.f32 %v480, 0.0
      %v520 = vmax.f32 %v482, 0.0
      %v521 = vmax.f32 %v485, 0.0
      %v522 = vmax.f32 %v487, 0.0
      %v523 = vmax.f32 %v490, 0.0
      %v524 = vmax.f32 %v492, 0.0
      %v525 = vmax.f32 %v495, 0.0
      %v526 = vmax.f32 %v497, 0.0
      %v527 = vmax.f32 %v500, 0.0
      %v528 = vmax.f32 %v502, 0.0
      %v529 = vmax.f32 %v505, 0.0
      %v530 = vmax.f32 %v507, 0.0
      %v531 = vmax.f32 %v510, 0.0
      %v532 = vmax.f32 %v512, 0.0
      %v533 = vmax.f32 %v515, 0.0
      %v534 = vmax.f32 %v517, 0.0
      %s535 = scalar_lea.vmem %s2, 64
      %v536 = vld [vmem:[%s535] sm:$0xf]
      %v537 = vld [vmem:[%s535 + $0x4] sm:$0xf]
      %v538 = vld [vmem:[%s535 + $0x8] sm:$0xf]
      %v539 = vld [vmem:[%s535 + $0xc] sm:$0xf]
      %v540 = vld [vmem:[%s535 + $0x10] sm:$0xf]
      %v541 = vld [vmem:[%s535 + $0x14] sm:$0xf]
      %v542 = vld [vmem:[%s535 + $0x18] sm:$0xf]
      %v543 = vld [vmem:[%s535 + $0x1c] sm:$0xf]
      %v544 = vld [vmem:[%s535 + $0x20] sm:$0xf]
      %v545 = vld [vmem:[%s535 + $0x24] sm:$0xf]
      %v546 = vld [vmem:[%s535 + $0x28] sm:$0xf]
      %v547 = vld [vmem:[%s535 + $0x2c] sm:$0xf]
      %v548 = vld [vmem:[%s535 + $0x30] sm:$0xf]
      %v549 = vld [vmem:[%s535 + $0x34] sm:$0xf]
      %v550 = vld [vmem:[%s535 + $0x38] sm:$0xf]
      %v551 = vld [vmem:[%s535 + $0x3c] sm:$0xf]
      %v552 = vld [vmem:[%s4 + $0x2] sm:$0x1]
      %v553 = vpack.c.bf16 %v520, %v519
      %v554 = vpack.c.bf16 %v522, %v521
      %v555 = vpack.c.bf16 %v524, %v523
      %v556 = vpack.c.bf16 %v526, %v525
      %v557 = vpack.c.bf16 %v528, %v527
      %v558 = vpack.c.bf16 %v530, %v529
      %v559 = vpack.c.bf16 %v532, %v531
      %v560 = vpack.c.bf16 %v534, %v533
      %v561 = vperm.slane %v552, 0
      %v578 = vunpack.c.l.b16 %v536
      %v579 = vunpack.c.l.b16 %v537
      %v580 = vunpack.c.l.b16 %v538
      %v581 = vunpack.c.l.b16 %v539
      %v582 = vunpack.c.l.b16 %v540
      %v583 = vunpack.c.l.b16 %v541
      %v584 = vunpack.c.l.b16 %v542
      %v585 = vunpack.c.l.b16 %v543
      %v586 = vunpack.c.l.b16 %v544
      %v587 = vunpack.c.l.b16 %v545
      %v588 = vunpack.c.l.b16 %v546
      %v589 = vunpack.c.l.b16 %v547
      %v590 = vunpack.c.l.b16 %v548
      %v591 = vunpack.c.l.b16 %v549
      %v592 = vunpack.c.l.b16 %v550
      %v593 = vunpack.c.l.b16 %v551
      %v594 = vpack.c.b16 %v579, %v578
      %v595 = vpack.c.b16 %v581, %v580
      %v596 = vpack.c.b16 %v583, %v582
      %v597 = vpack.c.b16 %v585, %v584
      %v598 = vpack.c.b16 %v587, %v586
      %v599 = vpack.c.b16 %v589, %v588
      %v600 = vpack.c.b16 %v591, %v590
      %v601 = vpack.c.b16 %v593, %v592
      %610 = vmatpush.bf16.msra.mxu0 %v601
      %611 = vmatpush.bf16.msra.mxu0 %v600
      %612 = vmatpush.bf16.msra.mxu0 %v599
      %613 = vmatpush.bf16.msra.mxu0 %v598
      %614 = vmatpush.bf16.msra.mxu0 %v597
      %615 = vmatpush.bf16.msra.mxu0 %v596
      %616 = vmatpush.bf16.msra.mxu0 %v595
      %617 = vmatpush.bf16.msra.mxu0 %v594
      %618 = vmatmul.bf16.gmra.mxu0 %v553
      %v619 = vpop.f32.mrf.mxu0
      %v620 = vadd.f32 %v561, %v619
      %v621 = vpop.f32.mrf.mxu0
      %v622 = vadd.f32 %v561, %v621
      %623 = vmatmul.bf16.gmra.mxu0 %v554
      %v624 = vpop.f32.mrf.mxu0
      %v625 = vadd.f32 %v561, %v624
      %v626 = vpop.f32.mrf.mxu0
      %v627 = vadd.f32 %v561, %v626
      %628 = vmatmul.bf16.gmra.mxu0 %v555
      %v629 = vpop.f32.mrf.mxu0
      %v630 = vadd.f32 %v561, %v629
      %v631 = vpop.f32.mrf.mxu0
      %v632 = vadd.f32 %v561, %v631
      %633 = vmatmul.bf16.gmra.mxu0 %v556
      %v634 = vpop.f32.mrf.mxu0
      %v635 = vadd.f32 %v561, %v634
      %v636 = vpop.f32.mrf.mxu0
      %v637 = vadd.f32 %v561, %v636
      %638 = vmatmul.bf16.gmra.mxu0 %v557
      %v639 = vpop.f32.mrf.mxu0
      %v640 = vadd.f32 %v561, %v639
      %v641 = vpop.f32.mrf.mxu0
      %v642 = vadd.f32 %v561, %v641
      %643 = vmatmul.bf16.gmra.mxu0 %v558
      %v644 = vpop.f32.mrf.mxu0
      %v645 = vadd.f32 %v561, %v644
      %v646 = vpop.f32.mrf.mxu0
      %v647 = vadd.f32 %v561, %v646
      %648 = vmatmul.bf16.gmra.mxu0 %v559
      %v649 = vpop.f32.mrf.mxu0
      %v650 = vadd.f32 %v561, %v649
      %v651 = vpop.f32.mrf.mxu0
      %v652 = vadd.f32 %v561, %v651
      %653 = vmatmul.bf16.gmra.mxu0 %v560
      %v654 = vpop.f32.mrf.mxu0
      %v655 = vadd.f32 %v561, %v654
      %v656 = vpop.f32.mrf.mxu0
      %v657 = vadd.f32 %v561, %v656
      %658 = vdwg.mxu0
      %v659 = vmax.f32 %v620, 0.0
      %v660 = vmax.f32 %v622, 0.0
      %v661 = vmax.f32 %v625, 0.0
      %v662 = vmax.f32 %v627, 0.0
      %v663 = vmax.f32 %v630, 0.0
      %v664 = vmax.f32 %v632, 0.0
      %v665 = vmax.f32 %v635, 0.0
      %v666 = vmax.f32 %v637, 0.0
      %v667 = vmax.f32 %v640, 0.0
      %v668 = vmax.f32 %v642, 0.0
      %v669 = vmax.f32 %v645, 0.0
      %v670 = vmax.f32 %v647, 0.0
      %v671 = vmax.f32 %v650, 0.0
      %v672 = vmax.f32 %v652, 0.0
      %v673 = vmax.f32 %v655, 0.0
      %v674 = vmax.f32 %v657, 0.0
      %s675 = scalar_lea.vmem %s2, 128
      %v676 = vld [vmem:[%s675] sm:$0xf]
      %v677 = vld [vmem:[%s675 + $0x4] sm:$0xf]
      %v678 = vld [vmem:[%s675 + $0x8] sm:$0xf]
      %v679 = vld [vmem:[%s675 + $0xc] sm:$0xf]
      %v680 = vld [vmem:[%s675 + $0x10] sm:$0xf]
      %v681 = vld [vmem:[%s675 + $0x14] sm:$0xf]
      %v682 = vld [vmem:[%s675 + $0x18] sm:$0xf]
      %v683 = vld [vmem:[%s675 + $0x1c] sm:$0xf]
      %v684 = vld [vmem:[%s675 + $0x20] sm:$0xf]
      %v685 = vld [vmem:[%s675 + $0x24] sm:$0xf]
      %v686 = vld [vmem:[%s675 + $0x28] sm:$0xf]
      %v687 = vld [vmem:[%s675 + $0x2c] sm:$0xf]
      %v688 = vld [vmem:[%s675 + $0x30] sm:$0xf]
      %v689 = vld [vmem:[%s675 + $0x34] sm:$0xf]
      %v690 = vld [vmem:[%s675 + $0x38] sm:$0xf]
      %v691 = vld [vmem:[%s675 + $0x3c] sm:$0xf]
      %v692 = vld [vmem:[%s4 + $0x3] sm:$0x1]
      %v693 = vpack.c.bf16 %v660, %v659
      %v694 = vpack.c.bf16 %v662, %v661
      %v695 = vpack.c.bf16 %v664, %v663
      %v696 = vpack.c.bf16 %v666, %v665
      %v697 = vpack.c.bf16 %v668, %v667
      %v698 = vpack.c.bf16 %v670, %v669
      %v699 = vpack.c.bf16 %v672, %v671
      %v700 = vpack.c.bf16 %v674, %v673
      %v701 = vperm.slane %v692, 0
      %v718 = vunpack.c.l.b16 %v676
      %v719 = vunpack.c.l.b16 %v677
      %v720 = vunpack.c.l.b16 %v678
      %v721 = vunpack.c.l.b16 %v679
      %v722 = vunpack.c.l.b16 %v680
      %v723 = vunpack.c.l.b16 %v681
      %v724 = vunpack.c.l.b16 %v682
      %v725 = vunpack.c.l.b16 %v683
      %v726 = vunpack.c.l.b16 %v684
      %v727 = vunpack.c.l.b16 %v685
      %v728 = vunpack.c.l.b16 %v686
      %v729 = vunpack.c.l.b16 %v687
      %v730 = vunpack.c.l.b16 %v688
      %v731 = vunpack.c.l.b16 %v689
      %v732 = vunpack.c.l.b16 %v690
      %v733 = vunpack.c.l.b16 %v691
      %v734 = vpack.c.b16 %v719, %v718
      %v735 = vpack.c.b16 %v721, %v720
      %v736 = vpack.c.b16 %v723, %v722
      %v737 = vpack.c.b16 %v725, %v724
      %v738 = vpack.c.b16 %v727, %v726
      %v739 = vpack.c.b16 %v729, %v728
      %v740 = vpack.c.b16 %v731, %v730
      %v741 = vpack.c.b16 %v733, %v732
      %750 = vmatpush.bf16.msra.mxu0 %v741
      %751 = vmatpush.bf16.msra.mxu0 %v740
      %752 = vmatpush.bf16.msra.mxu0 %v739
      %753 = vmatpush.bf16.msra.mxu0 %v738
      %754 = vmatpush.bf16.msra.mxu0 %v737
      %755 = vmatpush.bf16.msra.mxu0 %v736
      %756 = vmatpush.bf16.msra.mxu0 %v735
      %757 = vmatpush.bf16.msra.mxu0 %v734
      %758 = vmatmul.bf16.gmra.mxu0 %v693
      %v759 = vpop.f32.mrf.mxu0
      %v760 = vadd.f32 %v701, %v759
      %v761 = vpop.f32.mrf.mxu0
      %v762 = vadd.f32 %v701, %v761
      %763 = vmatmul.bf16.gmra.mxu0 %v694
      %v764 = vpop.f32.mrf.mxu0
      %v765 = vadd.f32 %v701, %v764
      %v766 = vpop.f32.mrf.mxu0
      %v767 = vadd.f32 %v701, %v766
      %768 = vmatmul.bf16.gmra.mxu0 %v695
      %v769 = vpop.f32.mrf.mxu0
      %v770 = vadd.f32 %v701, %v769
      %v771 = vpop.f32.mrf.mxu0
      %v772 = vadd.f32 %v701, %v771
      %773 = vmatmul.bf16.gmra.mxu0 %v696
      %v774 = vpop.f32.mrf.mxu0
      %v775 = vadd.f32 %v701, %v774
      %v776 = vpop.f32.mrf.mxu0
      %v777 = vadd.f32 %v701, %v776
      %778 = vmatmul.bf16.gmra.mxu0 %v697
      %v779 = vpop.f32.mrf.mxu0
      %v780 = vadd.f32 %v701, %v779
      %v781 = vpop.f32.mrf.mxu0
      %v782 = vadd.f32 %v701, %v781
      %783 = vmatmul.bf16.gmra.mxu0 %v698
      %v784 = vpop.f32.mrf.mxu0
      %v785 = vadd.f32 %v701, %v784
      %v786 = vpop.f32.mrf.mxu0
      %v787 = vadd.f32 %v701, %v786
      %788 = vmatmul.bf16.gmra.mxu0 %v699
      %v789 = vpop.f32.mrf.mxu0
      %v790 = vadd.f32 %v701, %v789
      %v791 = vpop.f32.mrf.mxu0
      %v792 = vadd.f32 %v701, %v791
      %793 = vmatmul.bf16.gmra.mxu0 %v700
      %v794 = vpop.f32.mrf.mxu0
      %v795 = vadd.f32 %v701, %v794
      %v796 = vpop.f32.mrf.mxu0
      %v797 = vadd.f32 %v701, %v796
      %798 = vdwg.mxu0
      %v799 = vmax.f32 %v760, 0.0
      %v800 = vmax.f32 %v762, 0.0
      %v801 = vmax.f32 %v765, 0.0
      %v802 = vmax.f32 %v767, 0.0
      %v803 = vmax.f32 %v770, 0.0
      %v804 = vmax.f32 %v772, 0.0
      %v805 = vmax.f32 %v775, 0.0
      %v806 = vmax.f32 %v777, 0.0
      %v807 = vmax.f32 %v780, 0.0
      %v808 = vmax.f32 %v782, 0.0
      %v809 = vmax.f32 %v785, 0.0
      %v810 = vmax.f32 %v787, 0.0
      %v811 = vmax.f32 %v790, 0.0
      %v812 = vmax.f32 %v792, 0.0
      %v813 = vmax.f32 %v795, 0.0
      %v814 = vmax.f32 %v797, 0.0
      %s815 = scalar_lea.vmem %s2, 192
      %v816 = vld [vmem:[%s815] sm:$0xf]
      %v817 = vld [vmem:[%s815 + $0x4] sm:$0xf]
      %v818 = vld [vmem:[%s815 + $0x8] sm:$0xf]
      %v819 = vld [vmem:[%s815 + $0xc] sm:$0xf]
      %v820 = vld [vmem:[%s815 + $0x10] sm:$0xf]
      %v821 = vld [vmem:[%s815 + $0x14] sm:$0xf]
      %v822 = vld [vmem:[%s815 + $0x18] sm:$0xf]
      %v823 = vld [vmem:[%s815 + $0x1c] sm:$0xf]
      %v824 = vld [vmem:[%s815 + $0x20] sm:$0xf]
      %v825 = vld [vmem:[%s815 + $0x24] sm:$0xf]
      %v826 = vld [vmem:[%s815 + $0x28] sm:$0xf]
      %v827 = vld [vmem:[%s815 + $0x2c] sm:$0xf]
      %v828 = vld [vmem:[%s815 + $0x30] sm:$0xf]
      %v829 = vld [vmem:[%s815 + $0x34] sm:$0xf]
      %v830 = vld [vmem:[%s815 + $0x38] sm:$0xf]
      %v831 = vld [vmem:[%s815 + $0x3c] sm:$0xf]
      %v832 = vld [vmem:[%s4 + $0x4] sm:$0x1]
      %v833 = vpack.c.bf16 %v800, %v799
      %v834 = vpack.c.bf16 %v802, %v801
      %v835 = vpack.c.bf16 %v804, %v803
      %v836 = vpack.c.bf16 %v806, %v805
      %v837 = vpack.c.bf16 %v808, %v807
      %v838 = vpack.c.bf16 %v810, %v809
      %v839 = vpack.c.bf16 %v812, %v811
      %v840 = vpack.c.bf16 %v814, %v813
      %v841 = vperm.slane %v832, 0
      %v858 = vunpack.c.l.b16 %v816
      %v859 = vunpack.c.l.b16 %v817
      %v860 = vunpack.c.l.b16 %v818
      %v861 = vunpack.c.l.b16 %v819
      %v862 = vunpack.c.l.b16 %v820
      %v863 = vunpack.c.l.b16 %v821
      %v864 = vunpack.c.l.b16 %v822
      %v865 = vunpack.c.l.b16 %v823
      %v866 = vunpack.c.l.b16 %v824
      %v867 = vunpack.c.l.b16 %v825
      %v868 = vunpack.c.l.b16 %v826
      %v869 = vunpack.c.l.b16 %v827
      %v870 = vunpack.c.l.b16 %v828
      %v871 = vunpack.c.l.b16 %v829
      %v872 = vunpack.c.l.b16 %v830
      %v873 = vunpack.c.l.b16 %v831
      %v874 = vpack.c.b16 %v859, %v858
      %v875 = vpack.c.b16 %v861, %v860
      %v876 = vpack.c.b16 %v863, %v862
      %v877 = vpack.c.b16 %v865, %v864
      %v878 = vpack.c.b16 %v867, %v866
      %v879 = vpack.c.b16 %v869, %v868
      %v880 = vpack.c.b16 %v871, %v870
      %v881 = vpack.c.b16 %v873, %v872
      %890 = vmatpush.bf16.msra.mxu0 %v881
      %891 = vmatpush.bf16.msra.mxu0 %v880
      %892 = vmatpush.bf16.msra.mxu0 %v879
      %893 = vmatpush.bf16.msra.mxu0 %v878
      %894 = vmatpush.bf16.msra.mxu0 %v877
      %895 = vmatpush.bf16.msra.mxu0 %v876
      %896 = vmatpush.bf16.msra.mxu0 %v875
      %897 = vmatpush.bf16.msra.mxu0 %v874
      %898 = vmatmul.bf16.gmra.mxu0 %v833
      %v899 = vpop.f32.mrf.mxu0
      %v900 = vadd.f32 %v841, %v899
      %v901 = vpop.f32.mrf.mxu0
      %v902 = vadd.f32 %v841, %v901
      %903 = vmatmul.bf16.gmra.mxu0 %v834
      %v904 = vpop.f32.mrf.mxu0
      %v905 = vadd.f32 %v841, %v904
      %v906 = vpop.f32.mrf.mxu0
      %v907 = vadd.f32 %v841, %v906
      %908 = vmatmul.bf16.gmra.mxu0 %v835
      %v909 = vpop.f32.mrf.mxu0
      %v910 = vadd.f32 %v841, %v909
      %v911 = vpop.f32.mrf.mxu0
      %v912 = vadd.f32 %v841, %v911
      %913 = vmatmul.bf16.gmra.mxu0 %v836
      %v914 = vpop.f32.mrf.mxu0
      %v915 = vadd.f32 %v841, %v914
      %v916 = vpop.f32.mrf.mxu0
      %v917 = vadd.f32 %v841, %v916
      %918 = vmatmul.bf16.gmra.mxu0 %v837
      %v919 = vpop.f32.mrf.mxu0
      %v920 = vadd.f32 %v841, %v919
      %v921 = vpop.f32.mrf.mxu0
      %v922 = vadd.f32 %v841, %v921
      %923 = vmatmul.bf16.gmra.mxu0 %v838
      %v924 = vpop.f32.mrf.mxu0
      %v925 = vadd.f32 %v841, %v924
      %v926 = vpop.f32.mrf.mxu0
      %v927 = vadd.f32 %v841, %v926
      %928 = vmatmul.bf16.gmra.mxu0 %v839
      %v929 = vpop.f32.mrf.mxu0
      %v930 = vadd.f32 %v841, %v929
      %v931 = vpop.f32.mrf.mxu0
      %v932 = vadd.f32 %v841, %v931
      %933 = vmatmul.bf16.gmra.mxu0 %v840
      %v934 = vpop.f32.mrf.mxu0
      %v935 = vadd.f32 %v841, %v934
      %v936 = vpop.f32.mrf.mxu0
      %v937 = vadd.f32 %v841, %v936
      %938 = vdwg.mxu0
      %v939 = vmax.f32 %v900, 0.0
      %v940 = vmax.f32 %v902, 0.0
      %v941 = vmax.f32 %v905, 0.0
      %v942 = vmax.f32 %v907, 0.0
      %v943 = vmax.f32 %v910, 0.0
      %v944 = vmax.f32 %v912, 0.0
      %v945 = vmax.f32 %v915, 0.0
      %v946 = vmax.f32 %v917, 0.0
      %v947 = vmax.f32 %v920, 0.0
      %v948 = vmax.f32 %v922, 0.0
      %v949 = vmax.f32 %v925, 0.0
      %v950 = vmax.f32 %v927, 0.0
      %v951 = vmax.f32 %v930, 0.0
      %v952 = vmax.f32 %v932, 0.0
      %v953 = vmax.f32 %v935, 0.0
      %v954 = vmax.f32 %v937, 0.0
      %s955 = scalar_lea.vmem %s2, 256
      %v956 = vld [vmem:[%s955] sm:$0xf]
      %v957 = vld [vmem:[%s955 + $0x4] sm:$0xf]
      %v958 = vld [vmem:[%s955 + $0x8] sm:$0xf]
      %v959 = vld [vmem:[%s955 + $0xc] sm:$0xf]
      %v960 = vld [vmem:[%s955 + $0x10] sm:$0xf]
      %v961 = vld [vmem:[%s955 + $0x14] sm:$0xf]
      %v962 = vld [vmem:[%s955 + $0x18] sm:$0xf]
      %v963 = vld [vmem:[%s955 + $0x1c] sm:$0xf]
      %v964 = vld [vmem:[%s955 + $0x20] sm:$0xf]
      %v965 = vld [vmem:[%s955 + $0x24] sm:$0xf]
      %v966 = vld [vmem:[%s955 + $0x28] sm:$0xf]
      %v967 = vld [vmem:[%s955 + $0x2c] sm:$0xf]
      %v968 = vld [vmem:[%s955 + $0x30] sm:$0xf]
      %v969 = vld [vmem:[%s955 + $0x34] sm:$0xf]
      %v970 = vld [vmem:[%s955 + $0x38] sm:$0xf]
      %v971 = vld [vmem:[%s955 + $0x3c] sm:$0xf]
      %v972 = vld [vmem:[%s4 + $0x5] sm:$0x1]
      %v973 = vpack.c.bf16 %v940, %v939
      %v974 = vpack.c.bf16 %v942, %v941
      %v975 = vpack.c.bf16 %v944, %v943
      %v976 = vpack.c.bf16 %v946, %v945
      %v977 = vpack.c.bf16 %v948, %v947
      %v978 = vpack.c.bf16 %v950, %v949
      %v979 = vpack.c.bf16 %v952, %v951
      %v980 = vpack.c.bf16 %v954, %v953
      %v981 = vperm.slane %v972, 0
      %v998 = vunpack.c.l.b16 %v956
      %v999 = vunpack.c.l.b16 %v957
      %v1000 = vunpack.c.l.b16 %v958
      %v1001 = vunpack.c.l.b16 %v959
      %v1002 = vunpack.c.l.b16 %v960
      %v1003 = vunpack.c.l.b16 %v961
      %v1004 = vunpack.c.l.b16 %v962
      %v1005 = vunpack.c.l.b16 %v963
      %v1006 = vunpack.c.l.b16 %v964
      %v1007 = vunpack.c.l.b16 %v965
      %v1008 = vunpack.c.l.b16 %v966
      %v1009 = vunpack.c.l.b16 %v967
      %v1010 = vunpack.c.l.b16 %v968
      %v1011 = vunpack.c.l.b16 %v969
      %v1012 = vunpack.c.l.b16 %v970
      %v1013 = vunpack.c.l.b16 %v971
      %v1014 = vpack.c.b16 %v999, %v998
      %v1015 = vpack.c.b16 %v1001, %v1000
      %v1016 = vpack.c.b16 %v1003, %v1002
      %v1017 = vpack.c.b16 %v1005, %v1004
      %v1018 = vpack.c.b16 %v1007, %v1006
      %v1019 = vpack.c.b16 %v1009, %v1008
      %v1020 = vpack.c.b16 %v1011, %v1010
      %v1021 = vpack.c.b16 %v1013, %v1012
      %1030 = vmatpush.bf16.msra.mxu0 %v1021
      %1031 = vmatpush.bf16.msra.mxu0 %v1020
      %1032 = vmatpush.bf16.msra.mxu0 %v1019
      %1033 = vmatpush.bf16.msra.mxu0 %v1018
      %1034 = vmatpush.bf16.msra.mxu0 %v1017
      %1035 = vmatpush.bf16.msra.mxu0 %v1016
      %1036 = vmatpush.bf16.msra.mxu0 %v1015
      %1037 = vmatpush.bf16.msra.mxu0 %v1014
      %1038 = vmatmul.bf16.gmra.mxu0 %v973
      %v1039 = vpop.f32.mrf.mxu0
      %v1040 = vadd.f32 %v981, %v1039
      %v1041 = vpop.f32.mrf.mxu0
      %v1042 = vadd.f32 %v981, %v1041
      %1043 = vmatmul.bf16.gmra.mxu0 %v974
      %v1044 = vpop.f32.mrf.mxu0
      %v1045 = vadd.f32 %v981, %v1044
      %v1046 = vpop.f32.mrf.mxu0
      %v1047 = vadd.f32 %v981, %v1046
      %1048 = vmatmul.bf16.gmra.mxu0 %v975
      %v1049 = vpop.f32.mrf.mxu0
      %v1050 = vadd.f32 %v981, %v1049
      %v1051 = vpop.f32.mrf.mxu0
      %v1052 = vadd.f32 %v981, %v1051
      %1053 = vmatmul.bf16.gmra.mxu0 %v976
      %v1054 = vpop.f32.mrf.mxu0
      %v1055 = vadd.f32 %v981, %v1054
      %v1056 = vpop.f32.mrf.mxu0
      %v1057 = vadd.f32 %v981, %v1056
      %1058 = vmatmul.bf16.gmra.mxu0 %v977
      %v1059 = vpop.f32.mrf.mxu0
      %v1060 = vadd.f32 %v981, %v1059
      %v1061 = vpop.f32.mrf.mxu0
      %v1062 = vadd.f32 %v981, %v1061
      %1063 = vmatmul.bf16.gmra.mxu0 %v978
      %v1064 = vpop.f32.mrf.mxu0
      %v1065 = vadd.f32 %v981, %v1064
      %v1066 = vpop.f32.mrf.mxu0
      %v1067 = vadd.f32 %v981, %v1066
      %1068 = vmatmul.bf16.gmra.mxu0 %v979
      %v1069 = vpop.f32.mrf.mxu0
      %v1070 = vadd.f32 %v981, %v1069
      %v1071 = vpop.f32.mrf.mxu0
      %v1072 = vadd.f32 %v981, %v1071
      %1073 = vmatmul.bf16.gmra.mxu0 %v980
      %v1074 = vpop.f32.mrf.mxu0
      %v1075 = vadd.f32 %v981, %v1074
      %v1076 = vpop.f32.mrf.mxu0
      %v1077 = vadd.f32 %v981, %v1076
      %1078 = vdwg.mxu0
      %v1079 = vmax.f32 %v1040, 0.0
      %v1080 = vmax.f32 %v1042, 0.0
      %v1081 = vmax.f32 %v1045, 0.0
      %v1082 = vmax.f32 %v1047, 0.0
      %v1083 = vmax.f32 %v1050, 0.0
      %v1084 = vmax.f32 %v1052, 0.0
      %v1085 = vmax.f32 %v1055, 0.0
      %v1086 = vmax.f32 %v1057, 0.0
      %v1087 = vmax.f32 %v1060, 0.0
      %v1088 = vmax.f32 %v1062, 0.0
      %v1089 = vmax.f32 %v1065, 0.0
      %v1090 = vmax.f32 %v1067, 0.0
      %v1091 = vmax.f32 %v1070, 0.0
      %v1092 = vmax.f32 %v1072, 0.0
      %v1093 = vmax.f32 %v1075, 0.0
      %v1094 = vmax.f32 %v1077, 0.0
      %s1095 = scalar_lea.vmem %s2, 320
      %v1096 = vld [vmem:[%s1095] sm:$0xf]
      %v1097 = vld [vmem:[%s1095 + $0x4] sm:$0xf]
      %v1098 = vld [vmem:[%s1095 + $0x8] sm:$0xf]
      %v1099 = vld [vmem:[%s1095 + $0xc] sm:$0xf]
      %v1100 = vld [vmem:[%s1095 + $0x10] sm:$0xf]
      %v1101 = vld [vmem:[%s1095 + $0x14] sm:$0xf]
      %v1102 = vld [vmem:[%s1095 + $0x18] sm:$0xf]
      %v1103 = vld [vmem:[%s1095 + $0x1c] sm:$0xf]
      %v1104 = vld [vmem:[%s1095 + $0x20] sm:$0xf]
      %v1105 = vld [vmem:[%s1095 + $0x24] sm:$0xf]
      %v1106 = vld [vmem:[%s1095 + $0x28] sm:$0xf]
      %v1107 = vld [vmem:[%s1095 + $0x2c] sm:$0xf]
      %v1108 = vld [vmem:[%s1095 + $0x30] sm:$0xf]
      %v1109 = vld [vmem:[%s1095 + $0x34] sm:$0xf]
      %v1110 = vld [vmem:[%s1095 + $0x38] sm:$0xf]
      %v1111 = vld [vmem:[%s1095 + $0x3c] sm:$0xf]
      %v1112 = vld [vmem:[%s4 + $0x6] sm:$0x1]
      %v1113 = vpack.c.bf16 %v1080, %v1079
      %v1114 = vpack.c.bf16 %v1082, %v1081
      %v1115 = vpack.c.bf16 %v1084, %v1083
      %v1116 = vpack.c.bf16 %v1086, %v1085
      %v1117 = vpack.c.bf16 %v1088, %v1087
      %v1118 = vpack.c.bf16 %v1090, %v1089
      %v1119 = vpack.c.bf16 %v1092, %v1091
      %v1120 = vpack.c.bf16 %v1094, %v1093
      %v1121 = vperm.slane %v1112, 0
      %v1138 = vunpack.c.l.b16 %v1096
      %v1139 = vunpack.c.l.b16 %v1097
      %v1140 = vunpack.c.l.b16 %v1098
      %v1141 = vunpack.c.l.b16 %v1099
      %v1142 = vunpack.c.l.b16 %v1100
      %v1143 = vunpack.c.l.b16 %v1101
      %v1144 = vunpack.c.l.b16 %v1102
      %v1145 = vunpack.c.l.b16 %v1103
      %v1146 = vunpack.c.l.b16 %v1104
      %v1147 = vunpack.c.l.b16 %v1105
      %v1148 = vunpack.c.l.b16 %v1106
      %v1149 = vunpack.c.l.b16 %v1107
      %v1150 = vunpack.c.l.b16 %v1108
      %v1151 = vunpack.c.l.b16 %v1109
      %v1152 = vunpack.c.l.b16 %v1110
      %v1153 = vunpack.c.l.b16 %v1111
      %v1154 = vpack.c.b16 %v1139, %v1138
      %v1155 = vpack.c.b16 %v1141, %v1140
      %v1156 = vpack.c.b16 %v1143, %v1142
      %v1157 = vpack.c.b16 %v1145, %v1144
      %v1158 = vpack.c.b16 %v1147, %v1146
      %v1159 = vpack.c.b16 %v1149, %v1148
      %v1160 = vpack.c.b16 %v1151, %v1150
      %v1161 = vpack.c.b16 %v1153, %v1152
      %1170 = vmatpush.bf16.msra.mxu0 %v1161
      %1171 = vmatpush.bf16.msra.mxu0 %v1160
      %1172 = vmatpush.bf16.msra.mxu0 %v1159
      %1173 = vmatpush.bf16.msra.mxu0 %v1158
      %1174 = vmatpush.bf16.msra.mxu0 %v1157
      %1175 = vmatpush.bf16.msra.mxu0 %v1156
      %1176 = vmatpush.bf16.msra.mxu0 %v1155
      %1177 = vmatpush.bf16.msra.mxu0 %v1154
      %1178 = vmatmul.bf16.gmra.mxu0 %v1113
      %v1179 = vpop.f32.mrf.mxu0
      %v1180 = vadd.f32 %v1121, %v1179
      %v1181 = vpop.f32.mrf.mxu0
      %v1182 = vadd.f32 %v1121, %v1181
      %1183 = vmatmul.bf16.gmra.mxu0 %v1114
      %v1184 = vpop.f32.mrf.mxu0
      %v1185 = vadd.f32 %v1121, %v1184
      %v1186 = vpop.f32.mrf.mxu0
      %v1187 = vadd.f32 %v1121, %v1186
      %1188 = vmatmul.bf16.gmra.mxu0 %v1115
      %v1189 = vpop.f32.mrf.mxu0
      %v1190 = vadd.f32 %v1121, %v1189
      %v1191 = vpop.f32.mrf.mxu0
      %v1192 = vadd.f32 %v1121, %v1191
      %1193 = vmatmul.bf16.gmra.mxu0 %v1116
      %v1194 = vpop.f32.mrf.mxu0
      %v1195 = vadd.f32 %v1121, %v1194
      %v1196 = vpop.f32.mrf.mxu0
      %v1197 = vadd.f32 %v1121, %v1196
      %1198 = vmatmul.bf16.gmra.mxu0 %v1117
      %v1199 = vpop.f32.mrf.mxu0
      %v1200 = vadd.f32 %v1121, %v1199
      %v1201 = vpop.f32.mrf.mxu0
      %v1202 = vadd.f32 %v1121, %v1201
      %1203 = vmatmul.bf16.gmra.mxu0 %v1118
      %v1204 = vpop.f32.mrf.mxu0
      %v1205 = vadd.f32 %v1121, %v1204
      %v1206 = vpop.f32.mrf.mxu0
      %v1207 = vadd.f32 %v1121, %v1206
      %1208 = vmatmul.bf16.gmra.mxu0 %v1119
      %v1209 = vpop.f32.mrf.mxu0
      %v1210 = vadd.f32 %v1121, %v1209
      %v1211 = vpop.f32.mrf.mxu0
      %v1212 = vadd.f32 %v1121, %v1211
      %1213 = vmatmul.bf16.gmra.mxu0 %v1120
      %v1214 = vpop.f32.mrf.mxu0
      %v1215 = vadd.f32 %v1121, %v1214
      %v1216 = vpop.f32.mrf.mxu0
      %v1217 = vadd.f32 %v1121, %v1216
      %1218 = vdwg.mxu0
      %v1219 = vmax.f32 %v1180, 0.0
      %v1220 = vmax.f32 %v1182, 0.0
      %v1221 = vmax.f32 %v1185, 0.0
      %v1222 = vmax.f32 %v1187, 0.0
      %v1223 = vmax.f32 %v1190, 0.0
      %v1224 = vmax.f32 %v1192, 0.0
      %v1225 = vmax.f32 %v1195, 0.0
      %v1226 = vmax.f32 %v1197, 0.0
      %v1227 = vmax.f32 %v1200, 0.0
      %v1228 = vmax.f32 %v1202, 0.0
      %v1229 = vmax.f32 %v1205, 0.0
      %v1230 = vmax.f32 %v1207, 0.0
      %v1231 = vmax.f32 %v1210, 0.0
      %v1232 = vmax.f32 %v1212, 0.0
      %v1233 = vmax.f32 %v1215, 0.0
      %v1234 = vmax.f32 %v1217, 0.0
      %v1235 = vld [vmem:[%s3] sm:$0xf]
      %v1236 = vld [vmem:[%s3 + $0x4] sm:$0xf]
      %v1237 = vld [vmem:[%s3 + $0x8] sm:$0xf]
      %v1238 = vld [vmem:[%s3 + $0xc] sm:$0xf]
      %v1239 = vld [vmem:[%s3 + $0x10] sm:$0xf]
      %v1240 = vld [vmem:[%s3 + $0x14] sm:$0xf]
      %v1241 = vld [vmem:[%s3 + $0x18] sm:$0xf]
      %v1242 = vld [vmem:[%s3 + $0x1c] sm:$0xf]
      %v1243 = vld [vmem:[%s3 + $0x20] sm:$0xf]
      %v1244 = vld [vmem:[%s3 + $0x24] sm:$0xf]
      %v1245 = vld [vmem:[%s3 + $0x28] sm:$0xf]
      %v1246 = vld [vmem:[%s3 + $0x2c] sm:$0xf]
      %v1247 = vld [vmem:[%s3 + $0x30] sm:$0xf]
      %v1248 = vld [vmem:[%s3 + $0x34] sm:$0xf]
      %v1249 = vld [vmem:[%s3 + $0x38] sm:$0xf]
      %v1250 = vld [vmem:[%s3 + $0x3c] sm:$0xf]
      %v1251 = vld [vmem:[%s5] sm:$0x1]
      %v1252 = vpack.c.bf16 %v1220, %v1219
      %v1253 = vpack.c.bf16 %v1222, %v1221
      %v1254 = vpack.c.bf16 %v1224, %v1223
      %v1255 = vpack.c.bf16 %v1226, %v1225
      %v1256 = vpack.c.bf16 %v1228, %v1227
      %v1257 = vpack.c.bf16 %v1230, %v1229
      %v1258 = vpack.c.bf16 %v1232, %v1231
      %v1259 = vpack.c.bf16 %v1234, %v1233
      %v1261 = vperm.slane %v1251, 0
      %v1279 = vunpack.c.l.b16 %v1235
      %v1280 = vunpack.c.l.b16 %v1236
      %v1281 = vunpack.c.l.b16 %v1237
      %v1282 = vunpack.c.l.b16 %v1238
      %v1283 = vunpack.c.l.b16 %v1239
      %v1284 = vunpack.c.l.b16 %v1240
      %v1285 = vunpack.c.l.b16 %v1241
      %v1286 = vunpack.c.l.b16 %v1242
      %v1287 = vunpack.c.l.b16 %v1243
      %v1288 = vunpack.c.l.b16 %v1244
      %v1289 = vunpack.c.l.b16 %v1245
      %v1290 = vunpack.c.l.b16 %v1246
      %v1291 = vunpack.c.l.b16 %v1247
      %v1292 = vunpack.c.l.b16 %v1248
      %v1293 = vunpack.c.l.b16 %v1249
      %v1294 = vunpack.c.l.b16 %v1250
      %v1295 = vpack.c.b16 %v1280, %v1279
      %v1296 = vpack.c.b16 %v1282, %v1281
      %v1297 = vpack.c.b16 %v1284, %v1283
      %v1298 = vpack.c.b16 %v1286, %v1285
      %v1299 = vpack.c.b16 %v1288, %v1287
      %v1300 = vpack.c.b16 %v1290, %v1289
      %v1301 = vpack.c.b16 %v1292, %v1291
      %v1302 = vpack.c.b16 %v1294, %v1293
      %1311 = vmatpush.bf16.msra.mxu0 %v1302
      %1312 = vmatpush.bf16.msra.mxu0 %v1301
      %1313 = vmatpush.bf16.msra.mxu0 %v1300
      %1314 = vmatpush.bf16.msra.mxu0 %v1299
      %1315 = vmatpush.bf16.msra.mxu0 %v1298
      %1316 = vmatpush.bf16.msra.mxu0 %v1297
      %1317 = vmatpush.bf16.msra.mxu0 %v1296
      %1318 = vmatpush.bf16.msra.mxu0 %v1295
      %1319 = vmatmul.bf16.gmra.mxu0 %v1252
      %v1320 = vpop.f32.mrf.mxu0
      %v1321 = vadd.f32 %v1261, %v1320
      %v1322 = vpop.f32.mrf.mxu0
      %v1323 = vadd.f32 %v1261, %v1322
      %1324 = vmatmul.bf16.gmra.mxu0 %v1253
      %v1325 = vpop.f32.mrf.mxu0
      %v1326 = vadd.f32 %v1261, %v1325
      %v1327 = vpop.f32.mrf.mxu0
      %v1328 = vadd.f32 %v1261, %v1327
      %1329 = vmatmul.bf16.gmra.mxu0 %v1254
      %v1330 = vpop.f32.mrf.mxu0
      %v1331 = vadd.f32 %v1261, %v1330
      %v1332 = vpop.f32.mrf.mxu0
      %v1333 = vadd.f32 %v1261, %v1332
      %1334 = vmatmul.bf16.gmra.mxu0 %v1255
      %v1335 = vpop.f32.mrf.mxu0
      %v1336 = vadd.f32 %v1261, %v1335
      %v1337 = vpop.f32.mrf.mxu0
      %v1338 = vadd.f32 %v1261, %v1337
      %1339 = vmatmul.bf16.gmra.mxu0 %v1256
      %v1340 = vpop.f32.mrf.mxu0
      %v1341 = vadd.f32 %v1261, %v1340
      %v1342 = vpop.f32.mrf.mxu0
      %v1343 = vadd.f32 %v1261, %v1342
      %1344 = vmatmul.bf16.gmra.mxu0 %v1257
      %v1345 = vpop.f32.mrf.mxu0
      %v1346 = vadd.f32 %v1261, %v1345
      %v1347 = vpop.f32.mrf.mxu0
      %v1348 = vadd.f32 %v1261, %v1347
      %1349 = vmatmul.bf16.gmra.mxu0 %v1258
      %v1350 = vpop.f32.mrf.mxu0
      %v1351 = vadd.f32 %v1261, %v1350
      %v1352 = vpop.f32.mrf.mxu0
      %v1353 = vadd.f32 %v1261, %v1352
      %1354 = vmatmul.bf16.gmra.mxu0 %v1259
      %v1355 = vpop.f32.mrf.mxu0
      %v1356 = vadd.f32 %v1261, %v1355
      %v1357 = vpop.f32.mrf.mxu0
      %v1358 = vadd.f32 %v1261, %v1357
      %1359 = vdwg.mxu0
      %v1360 = vtanh.pop %v1321
      %v1361 = vtanh.pop %v1323
      %v1362 = vtanh.pop %v1326
      %v1363 = vtanh.pop %v1328
      %v1364 = vtanh.pop %v1331
      %v1365 = vtanh.pop %v1333
      %v1366 = vtanh.pop %v1336
      %v1367 = vtanh.pop %v1338
      %v1368 = vtanh.pop %v1341
      %v1369 = vtanh.pop %v1343
      %v1370 = vtanh.pop %v1346
      %v1371 = vtanh.pop %v1348
      %v1372 = vtanh.pop %v1351
      %v1373 = vtanh.pop %v1353
      %v1374 = vtanh.pop %v1356
      %v1375 = vtanh.pop %v1358
      %1376 = vst [vmem:[%s253] sm:$0xff] %v1360
      %1377 = vst [vmem:[%s253 + $0x8] sm:$0xff] %v1361
      %1378 = vst [vmem:[%s253 + $0x10] sm:$0xff] %v1362
      %1379 = vst [vmem:[%s253 + $0x18] sm:$0xff] %v1363
      %1380 = vst [vmem:[%s253 + $0x20] sm:$0xff] %v1364
      %1381 = vst [vmem:[%s253 + $0x28] sm:$0xff] %v1365
      %1382 = vst [vmem:[%s253 + $0x30] sm:$0xff] %v1366
      %1383 = vst [vmem:[%s253 + $0x38] sm:$0xff] %v1367
      %1384 = vst [vmem:[%s253 + $0x40] sm:$0xff] %v1368
      %1385 = vst [vmem:[%s253 + $0x48] sm:$0xff] %v1369
      %1386 = vst [vmem:[%s253 + $0x50] sm:$0xff] %v1370
      %1387 = vst [vmem:[%s253 + $0x58] sm:$0xff] %v1371
      %1388 = vst [vmem:[%s253 + $0x60] sm:$0xff] %v1372
      %1389 = vst [vmem:[%s253 + $0x68] sm:$0xff] %v1373
      %1390 = vst [vmem:[%s253 + $0x70] sm:$0xff] %v1374
      %1391 = vst [vmem:[%s253 + $0x78] sm:$0xff] %v1375
      %s1392 = smul.u32 16, %s17
      %p1393 = scmp.lt.s32.totalorder %s1392, 31
      %s1394 = scalar_select %p1393, %s1392, 31
      %s1395 = smul.addr %s1394, 8
      %s1396 = scalar_lea.vmem %s6, %s1395
      // Predicated region
      $region45: #{autoencoder3d_forward.1} parent=43 // pred_check
        %p1397 = pneg %p166
      $region46: #{autoencoder3d_forward.1} parent=43 // pred_check_branch
        %1399 = sbr.rel (%p1397) target = $region48
      $region47: #{autoencoder3d_forward.1} parent=43 // pred_region
        %s1400 = smul.u32 16, %s17
      $region48: #{autoencoder3d_forward.1} parent=43 // pred_fallthru
        _
    $region44: #{autoencoder3d_forward.1} parent=5 // pred_fallthru
      _
    %p1401 = scmp.le.s32.totalorder 2, %s12
    // Predicated region
    $region49: #{autoencoder3d_forward.1} parent=5 // pred_check
      %p1402 = pneg %p1401
    $region50: #{autoencoder3d_forward.1} parent=5 // pred_check_branch
      %1404 = sbr.rel (%p1402) target = $region52
    $region51: #{autoencoder3d_forward.1} parent=5 // pred_region
      %s1405 = ssub.s32 %s12, 2
      // Predicated region
      $region53: #{autoencoder3d_forward.1} parent=51 // pred_check
        %p1406 = pneg %p172
      $region54: #{autoencoder3d_forward.1} parent=51 // pred_check_branch
        %1408 = sbr.rel (%p1406) target = $region56
      $region55: #{autoencoder3d_forward.1} parent=51 // pred_region
        %s1409 = smul.u32 16, %s18
        %p1410 = scmp.lt.s32.totalorder %s1409, 31
        %s1411 = scalar_select %p1410, %s1409, 31
        %s1412 = smul.addr %s1411, 8
        %s1413 = scalar_lea.vmem %s6, %s1412
      $region56: #{autoencoder3d_forward.1} parent=51 // pred_fallthru
        _
    $region52: #{autoencoder3d_forward.1} parent=5 // pred_fallthru
      _
  $region6: #{autoencoder3d_forward.1} parent=0 // loop_footer
    %s16 = sadd.s32 1, %s12
  $region7: #{autoencoder3d_forward.1} parent=0 // loop_footer_branch
    %11 = sbr.rel target = $region3
  $region8: #{autoencoder3d_forward.1} parent=0 // loop_exit
    _

</llo_original>
